<compile_context>
chip_gen: v7x
topology: tpu7x:2x2x1
jax: 0.10.0
libtpu: 0.0.40
codegen_flags: <defaults>
</compile_context>

<pallas_src>
import jax
import jax.numpy as jnp
from jax.experimental import pallas as pl
from jax.experimental.pallas import tpu as pltpu


# ----------------------------------------------------------------------------
# Fused Pallas kernel: 4x encoder + concat + classify head, single launch,
# grid over the patch axis (reduction) with a VMEM GAP accumulator.
# ----------------------------------------------------------------------------
def ssl_fused_kernel(p_ref, wconv_ref, wbig_ref, aux_ref, out_ref, gap_ref):
  """Fused SSL forward (one grid step = one patch chunk of every image).

  p_ref    : (4B, PCHUNK, Kpad) bf16  patch chunk of all 4*B images
  wconv_ref: (Kpad, Cmid)       bf16  stand-in conv weight (VMEM resident)
  wbig_ref : (Cmid, 4*Hd)       f32   folded (fcw @ w1_f)/P blocks, frame-major
  aux_ref  : (4, Hd)            f32   rows: [b1', w2_row, (b2, 0...), unused]
  out_ref  : (B, 1)             f32   prediction
  gap_ref  : (4B, Cmid)         f32   VMEM scratch: per-image sum of relu(conv)
  """
  step = pl.program_id(0)
  nimg, pchunk, kpad = p_ref.shape
  cmid = wconv_ref.shape[1]

  @pl.when(step == 0)
  def _():
    gap_ref[...] = jnp.zeros_like(gap_ref)

  # Encoder conv for this patch chunk of ALL images in one bf16 MXU matmul.
  p2d = p_ref[...].reshape(nimg * pchunk, kpad)       # merge leading dims (8-aligned)
  conv = jnp.dot(p2d, wconv_ref[...],
                 preferred_element_type=jnp.float32)  # (4B*PCHUNK, Cmid) f32
  relu = jnp.maximum(conv, 0.0)

  # Global-average-pool = sublane sum per image, accumulated across chunks.
  # (1/P scale is folded into wbig wrapper-side; padded patch rows are zero.)
  gap_ref[...] += jnp.sum(relu.reshape(nimg, pchunk, cmid), axis=1)

  @pl.when(step == pl.num_programs(0) - 1)
  def _():
    b = out_ref.shape[0]
    hd = aux_ref.shape[1]
    b1p = aux_ref[0:1, :]       # (1, Hd)  b1 + fcb @ sum_f w1_f
    w2r = aux_ref[1:2, :]       # (1, Hd)
    b2 = aux_ref[2:3, 0:1]      # (1, 1)

    # One batched head matmul, then a static 4-way slice add realizes both the
    # frame concat and the Linear(40, 10):  h = sum_f gap_f @ (fcw @ w1_f)/P.
    hall = jnp.dot(gap_ref[...], wbig_ref[...],
                   preferred_element_type=jnp.float32)       # (4B, 4*Hd)
    h = (hall[0 * b:1 * b, 0 * hd:1 * hd]
         + hall[1 * b:2 * b, 1 * hd:2 * hd]
         + hall[2 * b:3 * b, 2 * hd:3 * hd]
         + hall[3 * b:4 * b, 3 * hd:4 * hd]
         + b1p)                                              # (B, Hd)
    h = jnp.where(h >= 0.0, h, 10.0 * h)                     # LeakyReLU(10)

    # Linear(10, 1) as VPU multiply + lane reduce (avoids an N=1 MXU matmul).
    out_ref[...] = jnp.sum(h * w2r, axis=1, keepdims=True) + b2   # (B, 1)


def ssl_fused_call(patches3, wconv_b, wbig, aux, *, pchunk):
  NB, Ppad, Kpad = patches3.shape
  Cmid = wconv_b.shape[1]
  Hd4 = wbig.shape[1]
  Hd = aux.shape[1]
  B = NB // 4
  nsteps = Ppad // pchunk
  return pl.pallas_call(
      ssl_fused_kernel,
      out_shape=jax.ShapeDtypeStruct((B, 1), jnp.float32),
      grid=(nsteps,),
      in_specs=[
          pl.BlockSpec((NB, pchunk, Kpad), lambda i: (0, i, 0)),  # streamed
          pl.BlockSpec((Kpad, Cmid), lambda i: (0, 0)),           # resident
          pl.BlockSpec((Cmid, Hd4), lambda i: (0, 0)),            # resident
          pl.BlockSpec((4, Hd), lambda i: (0, 0)),                # resident
      ],
      out_specs=pl.BlockSpec((B, 1), lambda i: (0, 0)),
      scratch_shapes=[pltpu.VMEM((NB, Cmid), jnp.float32)],
      compiler_params=pltpu.CompilerParams(
          # Patch axis is a reduction into the GAP accumulator -> arbitrary.
          dimension_semantics=("arbitrary",),
          # Sized for v7x's 64 MiB physical VMEM (32 MiB default scoped);
          # also valid on v5e/v6e.
          vmem_limit_bytes=32 * 1024 * 1024),
  )(patches3, wconv_b, wbig, aux)


# ----------------------------------------------------------------------------
# Glue (plain JAX): stack frames, NCHW -> NHWC, im2col, pad, weight folding.
# ----------------------------------------------------------------------------
def _im2col_valid_3x3(x_nchw):
  """NCHW images -> (N, Ho*Wo, 9*Cin) patches for a 3x3 valid conv."""
  x = jnp.transpose(x_nchw, (0, 2, 3, 1))  # NHWC
  N, H, W, C = x.shape
  Ho, Wo = H - 2, W - 2
  cols = []
  for dh in range(3):
    for dw in range(3):
      cols.append(x[:, dh:dh + Ho, dw:dw + Wo, :])
  p = jnp.concatenate(cols, axis=-1)          # (N, Ho, Wo, 9*C)
  return p.reshape(N, Ho * Wo, 9 * C)


PCHUNK = 64  # patch rows per grid step (multiple of 8)


@jax.jit
def ssl_forward(first, second, third, fourth, params):
  # Weights are stored (in, out) — already transposed from PyTorch's (out, in).
  wconv, fcw, fcb, w1, b1, w2, b2 = params
  B = first.shape[0]

  # One im2col over the stacked (frame-major) frames.
  stacked = jnp.concatenate([first, second, third, fourth], axis=0)  # (4B,C,H,W)
  patches = _im2col_valid_3x3(stacked)                               # (4B, P, K)
  NB, P, K = patches.shape

  # Pad P up to a multiple of PCHUNK and K up to a multiple of 32 (zeros are
  # inert for the conv+relu+sum), cast to bf16 for full-rate MXU.
  Ppad = ((P + PCHUNK - 1) // PCHUNK) * PCHUNK
  Kpad = ((K + 31) // 32) * 32
  patches3 = jnp.pad(patches, ((0, 0), (0, Ppad - P), (0, Kpad - K)))
  patches3 = patches3.astype(jnp.bfloat16)                           # (4B,Ppad,Kpad)
  wconv_b = jnp.pad(wconv, ((0, Kpad - K), (0, 0))).astype(jnp.bfloat16)

  # Fold encoder FC into the classify Linear (exact algebra) + GAP 1/P scale.
  F = fcw.shape[1]
  Hd = w1.shape[1]
  w1r = w1.reshape(4, F, Hd)                                         # per-frame blocks
  fcw1 = jnp.einsum("cf,nfh->nch", fcw, w1r)                         # (4, Cmid, Hd)
  wbig = jnp.concatenate([fcw1[f] for f in range(4)], axis=1) / P    # (Cmid, 4*Hd)
  b1p = b1 + fcb @ jnp.sum(w1r, axis=0)                              # (1, Hd)

  # Pack the small bias/vector params into one tensor (one tiny DMA).
  aux = jnp.zeros((4, Hd), jnp.float32)
  aux = aux.at[0, :].set(b1p[0])
  aux = aux.at[1, :].set(w2[:, 0])
  aux = aux.at[2, 0].set(b2[0, 0])

  return ssl_fused_call(patches3, wconv_b, wbig, aux, pchunk=PCHUNK)  # (B, 1)


# ----------------------------------------------------------------------------
# Pure-JAX reference (same stand-in encoder, f32 "highest") for sanity.
# ----------------------------------------------------------------------------
def ssl_reference(first, second, third, fourth, params):
  wconv, fcw, fcb, w1, b1, w2, b2 = params
  with jax.default_matmul_precision("highest"):
    def enc(x):
      p = _im2col_valid_3x3(x)                          # (B, P, K)
      h = jnp.maximum(jnp.einsum("bpk,kc->bpc", p, wconv), 0.0)
      g = jnp.mean(h, axis=1)                           # (B, Cmid)
      return g @ fcw + fcb                              # (B, 10)

    feats = jnp.concatenate(
        [enc(first), enc(second), enc(third), enc(fourth)], axis=1)  # (B, 40)
    h = feats @ w1 + b1
    h = jnp.where(h >= 0.0, h, 10.0 * h)
    return h @ w2 + b2                                  # (B, 1)


# ----------------------------------------------------------------------------
# Main
# ----------------------------------------------------------------------------
if __name__ == "__main__":
  B, Cin, H, W = 2, 3, 16, 16
  Cmid, FEAT, HID = 256, 10, 10
  K = 9 * Cin

  key = jax.random.PRNGKey(0)
  (k_in1, k_in2, k_in3, k_in4, k_wc, k_fw, k_fb,
   k_w1, k_b1, k_w2, k_b2) = jax.random.split(key, 11)

  first = jax.random.normal(k_in1, (B, Cin, H, W), jnp.float32)
  second = jax.random.normal(k_in2, (B, Cin, H, W), jnp.float32)
  third = jax.random.normal(k_in3, (B, Cin, H, W), jnp.float32)
  fourth = jax.random.normal(k_in4, (B, Cin, H, W), jnp.float32)

  # Deterministic synthetic parameters ((in, out) layout).
  wconv = 0.1 * jax.random.normal(k_wc, (K, Cmid), jnp.float32)
  fcw = 0.1 * jax.random.normal(k_fw, (Cmid, FEAT), jnp.float32)
  fcb = 0.1 * jax.random.normal(k_fb, (1, FEAT), jnp.float32)
  w1 = 0.1 * jax.random.normal(k_w1, (4 * FEAT, HID), jnp.float32)  # Linear(40,10)
  b1 = 0.1 * jax.random.normal(k_b1, (1, HID), jnp.float32)
  w2 = 0.1 * jax.random.normal(k_w2, (HID, 1), jnp.float32)          # Linear(10,1)
  b2 = 0.1 * jax.random.normal(k_b2, (1, 1), jnp.float32)

  params = (wconv, fcw, fcb, w1, b1, w2, b2)

  out = ssl_forward(first, second, third, fourth, params)
  out = jax.block_until_ready(out)
  assert out.shape == (B, 1) and out.dtype == jnp.float32

  ref = ssl_reference(first, second, third, fourth, params)
  # Tolerance covers the bf16 conv inputs and the x10 LeakyReLU amplification.
  assert bool(jnp.allclose(out, ref, atol=3e-2, rtol=3e-2)), (out, ref)

  print("KERNEL_OK")
</pallas_src>

<mosaic_0001>
module attributes {stable_mosaic.version = 11 : i64} {
  func.func @ssl_fused_kernel(%arg0: i32, %arg1: memref<8x64x32xbf16, #tpu.memory_space<vmem>>, %arg2: memref<32x256xbf16, #tpu.memory_space<vmem>>, %arg3: memref<256x40xf32, #tpu.memory_space<vmem>>, %arg4: memref<4x10xf32, #tpu.memory_space<vmem>>, %arg5: memref<2x1xf32, #tpu.memory_space<vmem>>, %arg6: memref<8x256xf32, #tpu.memory_space<vmem>>) attributes {dimension_semantics = [#tpu.dimension_semantics<arbitrary>], iteration_bounds = array<i64: 4>, scalar_prefetch = 0 : i64, scratch_operands = 1 : i64, tpu.core_type = #tpu.core_type<tc>, window_params = [{transform_indices = @transform_0, window_bounds = array<i64: 8, 64, 32>}, {pipeline_mode = #tpu.pipeline_mode<synchronous>, transform_indices = @transform_1, window_bounds = array<i64: 32, 256>}, {pipeline_mode = #tpu.pipeline_mode<synchronous>, transform_indices = @transform_2, window_bounds = array<i64: 256, 40>}, {pipeline_mode = #tpu.pipeline_mode<synchronous>, transform_indices = @transform_3, window_bounds = array<i64: 4, 10>}, {pipeline_mode = #tpu.pipeline_mode<synchronous>, transform_indices = @transform_4, window_bounds = array<i64: 2, 1>}]} {
    %c0_i32 = arith.constant 0 : i32
    %0 = arith.cmpi eq, %arg0, %c0_i32 : i32
    %1 = arith.extui %0 : i1 to i32
    %c0_i32_0 = arith.constant 0 : i32
    %2 = arith.cmpi ne, %1, %c0_i32_0 : i32
    scf.if %2 {
      %cst_12 = arith.constant 0.000000e+00 : f32
      %17 = vector.broadcast %cst_12 : f32 to vector<8x256xf32>
      %c0_13 = arith.constant 0 : index
      %c0_14 = arith.constant 0 : index
      %18 = vector.load %arg6[%c0_13, %c0_14] : memref<8x256xf32, #tpu.memory_space<vmem>>, vector<8x256xf32>
      tpu.vector_store %arg6[%c0_13, %c0_14], %17 {strides = array<i32>} : memref<8x256xf32, #tpu.memory_space<vmem>>, vector<8x256xf32>,
    } else {
    }
    %c0 = arith.constant 0 : index
    %c0_1 = arith.constant 0 : index
    %c0_2 = arith.constant 0 : index
    %3 = vector.load %arg1[%c0, %c0_1, %c0_2] : memref<8x64x32xbf16, #tpu.memory_space<vmem>>, vector<8x64x32xbf16>
    %4 = vector.shape_cast %3 : vector<8x64x32xbf16> to vector<512x32xbf16>
    %c0_3 = arith.constant 0 : index
    %c0_4 = arith.constant 0 : index
    %5 = vector.load %arg2[%c0_3, %c0_4] : memref<32x256xbf16, #tpu.memory_space<vmem>>, vector<32x256xbf16>
    %cst = arith.constant dense<0.000000e+00> : vector<512x256xf32>
    %6 = tpu.matmul %4, %5, %cst {dimension_numbers = #tpu.dot_dimension_numbers<[1], [0], [0], [1], [0, 0, 1, 1], [], []>} : vector<512x32xbf16>, vector<32x256xbf16>, vector<512x256xf32> -> vector<512x256xf32>
    %cst_5 = arith.constant 0.000000e+00 : f32
    %7 = vector.broadcast %cst_5 : f32 to vector<512x256xf32>
    %8 = arith.maximumf %6, %7 : vector<512x256xf32>
    %c0_6 = arith.constant 0 : index
    %c0_7 = arith.constant 0 : index
    %9 = vector.load %arg6[%c0_6, %c0_7] : memref<8x256xf32, #tpu.memory_space<vmem>>, vector<8x256xf32>
    %10 = vector.shape_cast %8 : vector<512x256xf32> to vector<8x64x256xf32>
    %cst_8 = arith.constant dense<0.000000e+00> : vector<8x256xf32>
    %11 = vector.multi_reduction <add>, %10, %cst_8 [1] : vector<8x64x256xf32> to vector<8x256xf32>
    %12 = arith.addf %9, %11 : vector<8x256xf32>
    %c0_9 = arith.constant 0 : index
    %c0_10 = arith.constant 0 : index
    %13 = vector.load %arg6[%c0_9, %c0_10] : memref<8x256xf32, #tpu.memory_space<vmem>>, vector<8x256xf32>
    tpu.vector_store %arg6[%c0_9, %c0_10], %12 {strides = array<i32>} : memref<8x256xf32, #tpu.memory_space<vmem>>, vector<8x256xf32>,
    %c3_i32 = arith.constant 3 : i32
    %14 = arith.cmpi eq, %arg0, %c3_i32 : i32
    %15 = arith.extui %14 : i1 to i32
    %c0_i32_11 = arith.constant 0 : i32
    %16 = arith.cmpi ne, %15, %c0_i32_11 : i32
    scf.if %16 {
      %c0_12 = arith.constant 0 : index
      %c0_13 = arith.constant 0 : index
      %17 = vector.load %arg4[%c0_12, %c0_13] : memref<4x10xf32, #tpu.memory_space<vmem>>, vector<1x10xf32>
      %c1 = arith.constant 1 : index
      %c0_14 = arith.constant 0 : index
      %18 = vector.load %arg4[%c1, %c0_14] : memref<4x10xf32, #tpu.memory_space<vmem>>, vector<1x10xf32>
      %c2 = arith.constant 2 : index
      %c0_15 = arith.constant 0 : index
      %19 = vector.load %arg4[%c2, %c0_15] : memref<4x10xf32, #tpu.memory_space<vmem>>, vector<1x1xf32>
      %c0_16 = arith.constant 0 : index
      %c0_17 = arith.constant 0 : index
      %20 = vector.load %arg6[%c0_16, %c0_17] : memref<8x256xf32, #tpu.memory_space<vmem>>, vector<8x256xf32>
      %c0_18 = arith.constant 0 : index
      %c0_19 = arith.constant 0 : index
      %21 = vector.load %arg3[%c0_18, %c0_19] : memref<256x40xf32, #tpu.memory_space<vmem>>, vector<256x40xf32>
      %cst_20 = arith.constant dense<0.000000e+00> : vector<8x40xf32>
      %22 = tpu.matmul %20, %21, %cst_20 {dimension_numbers = #tpu.dot_dimension_numbers<[1], [0], [0], [1], [0, 0, 1, 1], [], []>} : vector<8x256xf32>, vector<256x40xf32>, vector<8x40xf32> -> vector<8x40xf32>
      %23 = vector.extract_strided_slice %22 {offsets = [0, 0], sizes = [2, 10], strides = [1, 1]} : vector<8x40xf32> to vector<2x10xf32>
      %24 = vector.extract_strided_slice %22 {offsets = [2, 10], sizes = [2, 10], strides = [1, 1]} : vector<8x40xf32> to vector<2x10xf32>
      %25 = arith.addf %23, %24 : vector<2x10xf32>
      %26 = vector.extract_strided_slice %22 {offsets = [4, 20], sizes = [2, 10], strides = [1, 1]} : vector<8x40xf32> to vector<2x10xf32>
      %27 = arith.addf %25, %26 : vector<2x10xf32>
      %28 = vector.extract_strided_slice %22 {offsets = [6, 30], sizes = [2, 10], strides = [1, 1]} : vector<8x40xf32> to vector<2x10xf32>
      %29 = arith.addf %27, %28 : vector<2x10xf32>
      %30 = vector.broadcast %17 : vector<1x10xf32> to vector<2x10xf32>
      %31 = arith.addf %29, %30 : vector<2x10xf32>
      %cst_21 = arith.constant 0.000000e+00 : f32
      %32 = vector.broadcast %cst_21 : f32 to vector<2x10xf32>
      %33 = arith.cmpf oge, %31, %32 : vector<2x10xf32>
      %cst_22 = arith.constant 1.000000e+01 : f32
      %34 = vector.broadcast %cst_22 : f32 to vector<2x10xf32>
      %35 = arith.mulf %34, %31 : vector<2x10xf32>
      %36 = arith.select %33, %31, %35 : vector<2x10xi1>, vector<2x10xf32>
      %37 = vector.broadcast %18 : vector<1x10xf32> to vector<2x10xf32>
      %38 = arith.mulf %36, %37 : vector<2x10xf32>
      %cst_23 = arith.constant dense<0.000000e+00> : vector<2xf32>
      %39 = vector.multi_reduction <add>, %38, %cst_23 [1] : vector<2x10xf32> to vector<2xf32>
      %40 = vector.shape_cast %39 : vector<2xf32> to vector<2x1xf32>
      %41 = vector.broadcast %19 : vector<1x1xf32> to vector<2x1xf32>
      %42 = arith.addf %40, %41 : vector<2x1xf32>
      %c0_24 = arith.constant 0 : index
      %c0_25 = arith.constant 0 : index
      %43 = vector.load %arg5[%c0_24, %c0_25] : memref<2x1xf32, #tpu.memory_space<vmem>>, vector<2x1xf32>
      tpu.vector_store %arg5[%c0_24, %c0_25], %42 {strides = array<i32>} : memref<2x1xf32, #tpu.memory_space<vmem>>, vector<2x1xf32>,
    } else {
    }
    return
  }
  func.func @transform_0(%arg0: i32) -> (i32, i32, i32) {
    %c0_i32 = arith.constant 0 : i32
    %c0_i32_0 = arith.constant 0 : i32
    %c0_i32_1 = arith.constant 0 : i32
    return %c0_i32, %arg0, %c0_i32_0 : i32, i32, i32
  }
  func.func @transform_1(%arg0: i32) -> (i32, i32) {
    %c0_i32 = arith.constant 0 : i32
    %c0_i32_0 = arith.constant 0 : i32
    %c0_i32_1 = arith.constant 0 : i32
    return %c0_i32, %c0_i32_0 : i32, i32
  }
  func.func @transform_2(%arg0: i32) -> (i32, i32) {
    %c0_i32 = arith.constant 0 : i32
    %c0_i32_0 = arith.constant 0 : i32
    %c0_i32_1 = arith.constant 0 : i32
    return %c0_i32, %c0_i32_0 : i32, i32
  }
  func.func @transform_3(%arg0: i32) -> (i32, i32) {
    %c0_i32 = arith.constant 0 : i32
    %c0_i32_0 = arith.constant 0 : i32
    %c0_i32_1 = arith.constant 0 : i32
    return %c0_i32, %c0_i32_0 : i32, i32
  }
  func.func @transform_4(%arg0: i32) -> (i32, i32) {
    %c0_i32 = arith.constant 0 : i32
    %c0_i32_0 = arith.constant 0 : i32
    %c0_i32_1 = arith.constant 0 : i32
    return %c0_i32, %c0_i32_0 : i32, i32
  }
}

</mosaic_0001>

<llo_original>
// kernel: ssl_forward.1
$region0: #{ssl_forward.1}
  #allocation0 [shape = 'u32[]', space=smem, size = 0x4, offset = 0x4, fixed_abs, tag = 'smem constant byte address 0x4 - core index']
  #allocation1 [shape = 'u32[144,128]{1,0:T(1,128)}', space=vmem, size = 0x12000, scoped, tag = 'internal scratch']
  #allocation2 [shape = 'f32[8,256]{1,0:T(8,128)}', space=vmem, size = 0x2000, scoped, tag = 'scratch operand']
  %s0 = inlined_call_operand.vmem [shape: bf16[8,256,32], index: 0, kind: input, shape index: {}]
  %s1 = inlined_call_operand.vmem [shape: bf16[32,256], index: 1, kind: input, shape index: {}]
  %s2 = inlined_call_operand.vmem [shape: f32[256,40], index: 2, kind: input, shape index: {}]
  %s3 = inlined_call_operand.vmem [shape: f32[4,10], index: 3, kind: input, shape index: {}]
  %s4 = inlined_call_operand.vmem [shape: f32[2,1], index: 4, kind: output, shape index: {}]
  %s5 = sld [smem:[#allocation0]]
  $region98: #{ssl_forward.1} parent=0
    _
  %s7 = ssub.s32 1, %s5
  %s8 = scalar_select 0, %s7, %s5
  $region1: #{ssl_forward.1} parent=0
    #allocation3 [shape = 'u8[262144]{0}', space=vmem, size = 0x40000, scoped, tag = 'input window, operand 0']
    loop: start=0, step=1, limit=6
    $region2: #{ssl_forward.1} parent=1 // loop_pre_header
      _
    $region3: #{ssl_forward.1} parent=1 // loop_header
      %s10 = sphi 0, %s14
      %p11 = scmp.ge.s32.totalorder %s10, 6
      %s20 = sphi 0, %s22
      %s23 = sphi 0, %s20
      %s24 = sphi 0, %s23
      %s40 = sphi 0, %s24
      %s44 = sphi 0, %s44
      %s46 = sphi 0, %s44
      %s47 = sphi 0, %s46
      %s61 = sphi 0, %s47
      %s65 = sphi 0, %s65
      %s67 = sphi 0, %s65
      %s68 = sphi 0, %s67
      %s82 = sphi 0, %s68
      %s86 = sphi 0, %s86
      %s88 = sphi 0, %s86
      %s89 = sphi 0, %s88
      %s103 = sphi 0, %s89
      %s107 = sphi 0, %s107
      %s109 = sphi 0, %s107
      %s110 = sphi 0, %s109
      %s124 = sphi 0, %s110
    $region4: #{ssl_forward.1} parent=1 // loop_header_branch
      %13 = sbr.rel (%p11) target = $region8
    $region5: #{ssl_forward.1} parent=1 // loop_body
      %s15 = ssub.s32 %s10, 1
      %s16 = ssub.s32 %s10, 2
      %s17 = sadd.s32 %s10, 1
      %s18 = ssub.s32 %s10, %s17
      %p19 = scmp.eq.s32.totalorder %s18, 0
      %s21 = sadd.s32 %s20, 1
      %s22 = scalar_select %p19, %s20, %s21
      %p25 = pneg %p19
      %p26 = scmp.eq.s32.totalorder %s10, 3
      %p27 = por %p25, %p26
      %p28 = scmp.ne.s32.totalorder %s20, %s23
      %p29 = scmp.eq.s32.totalorder %s10, 0
      %p30 = por %p28, %p29
      %p31 = scmp.ne.s32.totalorder %s20, %s23
      %p32 = scmp.eq.s32.totalorder %s15, 3
      %p33 = por %p31, %p32
      %p34 = scmp.ne.s32.totalorder %s23, %s24
      %p35 = scmp.eq.s32.totalorder %s15, 0
      %p36 = por %p34, %p35
      %p37 = scmp.ne.s32.totalorder %s23, %s24
      %p38 = scmp.eq.s32.totalorder %s16, 3
      %p39 = por %p37, %p38
      %p41 = scmp.ne.s32.totalorder %s24, %s40
      %p42 = scmp.eq.s32.totalorder %s16, 0
      %p43 = por %p41, %p42
      %s45 = sadd.s32 %s44, 1
      %p48 = scmp.eq.s32.totalorder %s10, 3
      %p49 = scmp.ne.s32.totalorder %s44, %s46
      %p50 = scmp.eq.s32.totalorder %s10, 0
      %p51 = por %p49, %p50
      %p52 = scmp.ne.s32.totalorder %s44, %s46
      %p53 = scmp.eq.s32.totalorder %s15, 3
      %p54 = por %p52, %p53
      %p55 = scmp.ne.s32.totalorder %s46, %s47
      %p56 = scmp.eq.s32.totalorder %s15, 0
      %p57 = por %p55, %p56
      %p58 = scmp.ne.s32.totalorder %s46, %s47
      %p59 = scmp.eq.s32.totalorder %s16, 3
      %p60 = por %p58, %p59
      %p62 = scmp.ne.s32.totalorder %s47, %s61
      %p63 = scmp.eq.s32.totalorder %s16, 0
      %p64 = por %p62, %p63
      %s66 = sadd.s32 %s65, 1
      %p69 = scmp.eq.s32.totalorder %s10, 3
      %p70 = scmp.ne.s32.totalorder %s65, %s67
      %p71 = scmp.eq.s32.totalorder %s10, 0
      %p72 = por %p70, %p71
      %p73 = scmp.ne.s32.totalorder %s65, %s67
      %p74 = scmp.eq.s32.totalorder %s15, 3
      %p75 = por %p73, %p74
      %p76 = scmp.ne.s32.totalorder %s67, %s68
      %p77 = scmp.eq.s32.totalorder %s15, 0
      %p78 = por %p76, %p77
      %p79 = scmp.ne.s32.totalorder %s67, %s68
      %p80 = scmp.eq.s32.totalorder %s16, 3
      %p81 = por %p79, %p80
      %p83 = scmp.ne.s32.totalorder %s68, %s82
      %p84 = scmp.eq.s32.totalorder %s16, 0
      %p85 = por %p83, %p84
      %s87 = sadd.s32 %s86, 1
      %p90 = scmp.eq.s32.totalorder %s10, 3
      %p91 = scmp.ne.s32.totalorder %s86, %s88
      %p92 = scmp.eq.s32.totalorder %s10, 0
      %p93 = por %p91, %p92
      %p94 = scmp.ne.s32.totalorder %s86, %s88
      %p95 = scmp.eq.s32.totalorder %s15, 3
      %p96 = por %p94, %p95
      %p97 = scmp.ne.s32.totalorder %s88, %s89
      %p98 = scmp.eq.s32.totalorder %s15, 0
      %p99 = por %p97, %p98
      %p100 = scmp.ne.s32.totalorder %s88, %s89
      %p101 = scmp.eq.s32.totalorder %s16, 3
      %p102 = por %p100, %p101
      %p104 = scmp.ne.s32.totalorder %s89, %s103
      %p105 = scmp.eq.s32.totalorder %s16, 0
      %p106 = por %p104, %p105
      %s108 = sadd.s32 %s107, 1
      %p111 = scmp.eq.s32.totalorder %s10, 3
      %p112 = scmp.ne.s32.totalorder %s107, %s109
      %p113 = scmp.eq.s32.totalorder %s10, 0
      %p114 = por %p112, %p113
      %p115 = scmp.ne.s32.totalorder %s107, %s109
      %p116 = scmp.eq.s32.totalorder %s15, 3
      %p117 = por %p115, %p116
      %p118 = scmp.ne.s32.totalorder %s109, %s110
      %p119 = scmp.eq.s32.totalorder %s15, 0
      %p120 = por %p118, %p119
      %p121 = scmp.ne.s32.totalorder %s109, %s110
      %p122 = scmp.eq.s32.totalorder %s16, 3
      %p123 = por %p121, %p122
      %p125 = scmp.ne.s32.totalorder %s110, %s124
      %p126 = scmp.eq.s32.totalorder %s16, 0
      %p127 = por %p125, %p126
      %p128 = scmp.le.s32.totalorder 1, %s10
      %p129 = scmp.lt.s32.totalorder %s10, 5
      %p130 = pnand %p128, %p129
      %p131 = pneg %p130
      // Predicated region
      $region9: #{ssl_forward.1} parent=5 // pred_check
        _
      $region10: #{ssl_forward.1} parent=5 // pred_check_branch
        %133 = sbr.rel (%p130) target = $region12
      $region11: #{ssl_forward.1} parent=5 // pred_region
        %s134 = ssub.s32 %s10, 1
        // Predicated region
        $region13: #{ssl_forward.1} parent=11 // pred_check
          %p135 = pneg %p57
        $region14: #{ssl_forward.1} parent=11 // pred_check_branch
          %137 = sbr.rel (%p135) target = $region16
        $region15: #{ssl_forward.1} parent=11 // pred_region
          _
        $region16: #{ssl_forward.1} parent=11 // pred_fallthru
          _
        // Predicated region
        $region17: #{ssl_forward.1} parent=11 // pred_check
          %p138 = pneg %p78
        $region18: #{ssl_forward.1} parent=11 // pred_check_branch
          %140 = sbr.rel (%p138) target = $region20
        $region19: #{ssl_forward.1} parent=11 // pred_region
          _
        $region20: #{ssl_forward.1} parent=11 // pred_fallthru
          _
        // Predicated region
        $region21: #{ssl_forward.1} parent=11 // pred_check
          %p141 = pneg %p99
        $region22: #{ssl_forward.1} parent=11 // pred_check_branch
          %143 = sbr.rel (%p141) target = $region24
        $region23: #{ssl_forward.1} parent=11 // pred_region
          _
        $region24: #{ssl_forward.1} parent=11 // pred_fallthru
          _
      $region12: #{ssl_forward.1} parent=5 // pred_fallthru
        _
      %p144 = scmp.lt.s32.totalorder %s10, 4
      // Predicated region
      $region25: #{ssl_forward.1} parent=5 // pred_check
        %p145 = pneg %p144
      $region26: #{ssl_forward.1} parent=5 // pred_check_branch
        %147 = sbr.rel (%p145) target = $region28
      $region27: #{ssl_forward.1} parent=5 // pred_region
        // Predicated region
        $region29: #{ssl_forward.1} parent=27 // pred_check
          %p148 = pneg %p30
        $region30: #{ssl_forward.1} parent=27 // pred_check_branch
          %150 = sbr.rel (%p148) target = $region32
        $region31: #{ssl_forward.1} parent=27 // pred_region
          %s151 = sand.u32 %s20, 1
          %s152 = sand.u32 %s20, 1
          %s153 = smul.addr %s152, 256
          %s154 = scalar_lea.vmem [#allocation3], %s153
          %s155 = smul.u32 8, %s10
          %s156 = smul.addr %s155, 4
          %s157 = scalar_lea.vmem %s0, %s156
          // Predicated region
          $region33: #{ssl_forward.1} parent=31 // pred_check
            _
          $region34: #{ssl_forward.1} parent=31 // pred_check_branch
            %159 = sbr.rel (0) target = $region36
          $region35: #{ssl_forward.1} parent=31 // pred_region
            // Predicated region
            $region37: #{ssl_forward.1} parent=35 // pred_check
              _
            $region38: #{ssl_forward.1} parent=35 // pred_check_branch
              %161 = sbr.rel target = $region40
            $region39: #{ssl_forward.1} parent=35 // pred_region
              // Predicated region
              $region52: #{ssl_forward.1} parent=39 // pred_check
                _
              $region53: #{ssl_forward.1} parent=39 // pred_check_branch
                %302 = sbr.rel (0) target = $region55
              $region54: #{ssl_forward.1} parent=39 // pred_region
                loop: start=0, step=1, limit=1
                $region56: #{ssl_forward.1} parent=54 // loop_pre_header
                  _
                $region57: #{ssl_forward.1} parent=54 // loop_header
                  %s304 = sphi 0, %s308
                  %p305 = scmp.ge.s32.totalorder %s304, 1
                  %s309 = sphi %s157, %s157
                  %s310 = sphi %s154, %s154
                $region58: #{ssl_forward.1} parent=54 // loop_header_branch
                  %307 = sbr.rel (%p305) target = $region62
                $region59: #{ssl_forward.1} parent=54 // loop_body
                  _
                $region60: #{ssl_forward.1} parent=54 // loop_footer
                  %s308 = sadd.s32 1, %s304
                $region61: #{ssl_forward.1} parent=54 // loop_footer_branch
                  %303 = sbr.rel target = $region57
                $region62: #{ssl_forward.1} parent=54 // loop_exit
                  _
                loop: start=0, step=1, limit=1
                $region63: #{ssl_forward.1} parent=54 // loop_pre_header
                  _
                $region64: #{ssl_forward.1} parent=54 // loop_header
                  %s313 = sphi 0, %s317
                  %p314 = scmp.ge.s32.totalorder %s313, 1
                  %s318 = sphi %s157, %s157
                  %s319 = sphi %s154, %s154
                $region65: #{ssl_forward.1} parent=54 // loop_header_branch
                  %316 = sbr.rel (%p314) target = $region69
                $region66: #{ssl_forward.1} parent=54 // loop_body
                  %v320 = vld [vmem:[%s318] sm:$0xf]
                  %321 = vst [vmem:[%s319] sm:$0xf] %v320
                  %v322 = vld [vmem:[%s318 + $0x4] sm:$0xf]
                  %323 = vst [vmem:[%s319 + $0x4] sm:$0xf] %v322
                  %v324 = vld [vmem:[%s318 + $0x8] sm:$0xf]
                  %325 = vst [vmem:[%s319 + $0x8] sm:$0xf] %v324
                  %v326 = vld [vmem:[%s318 + $0xc] sm:$0xf]
                  %327 = vst [vmem:[%s319 + $0xc] sm:$0xf] %v326
                  %v328 = vld [vmem:[%s318 + $0x10] sm:$0xf]
                  %329 = vst [vmem:[%s319 + $0x10] sm:$0xf] %v328
                  %v330 = vld [vmem:[%s318 + $0x14] sm:$0xf]
                  %331 = vst [vmem:[%s319 + $0x14] sm:$0xf] %v330
                  %v332 = vld [vmem:[%s318 + $0x18] sm:$0xf]
                  %333 = vst [vmem:[%s319 + $0x18] sm:$0xf] %v332
                  %v334 = vld [vmem:[%s318 + $0x1c] sm:$0xf]
                  %335 = vst [vmem:[%s319 + $0x1c] sm:$0xf] %v334
                  %v336 = vld [vmem:[%s318 + $0x80] sm:$0xf]
                  %337 = vst [vmem:[%s319 + $0x20] sm:$0xf] %v336
                  %v338 = vld [vmem:[%s318 + $0x84] sm:$0xf]
                  %339 = vst [vmem:[%s319 + $0x24] sm:$0xf] %v338
                  %v340 = vld [vmem:[%s318 + $0x88] sm:$0xf]
                  %341 = vst [vmem:[%s319 + $0x28] sm:$0xf] %v340
                  %v342 = vld [vmem:[%s318 + $0x8c] sm:$0xf]
                  %343 = vst [vmem:[%s319 + $0x2c] sm:$0xf] %v342
                  %v344 = vld [vmem:[%s318 + $0x90] sm:$0xf]
                  %345 = vst [vmem:[%s319 + $0x30] sm:$0xf] %v344
                  %v346 = vld [vmem:[%s318 + $0x94] sm:$0xf]
                  %347 = vst [vmem:[%s319 + $0x34] sm:$0xf] %v346
                  %v348 = vld [vmem:[%s318 + $0x98] sm:$0xf]
                  %349 = vst [vmem:[%s319 + $0x38] sm:$0xf] %v348
                  %v350 = vld [vmem:[%s318 + $0x9c] sm:$0xf]
                  %351 = vst [vmem:[%s319 + $0x3c] sm:$0xf] %v350
                  %v352 = vld [vmem:[%s318 + $0x100] sm:$0xf]
                  %353 = vst [vmem:[%s319 + $0x40] sm:$0xf] %v352
                  %v354 = vld [vmem:[%s318 + $0x104] sm:$0xf]
                  %355 = vst [vmem:[%s319 + $0x44] sm:$0xf] %v354
                  %v356 = vld [vmem:[%s318 + $0x108] sm:$0xf]
                  %357 = vst [vmem:[%s319 + $0x48] sm:$0xf] %v356
                  %v358 = vld [vmem:[%s318 + $0x10c] sm:$0xf]
                  %359 = vst [vmem:[%s319 + $0x4c] sm:$0xf] %v358
                  %v360 = vld [vmem:[%s318 + $0x110] sm:$0xf]
                  %361 = vst [vmem:[%s319 + $0x50] sm:$0xf] %v360
                  %v362 = vld [vmem:[%s318 + $0x114] sm:$0xf]
                  %363 = vst [vmem:[%s319 + $0x54] sm:$0xf] %v362
                  %v364 = vld [vmem:[%s318 + $0x118] sm:$0xf]
                  %365 = vst [vmem:[%s319 + $0x58] sm:$0xf] %v364
                  %v366 = vld [vmem:[%s318 + $0x11c] sm:$0xf]
                  %367 = vst [vmem:[%s319 + $0x5c] sm:$0xf] %v366
                  %v368 = vld [vmem:[%s318 + $0x180] sm:$0xf]
                  %369 = vst [vmem:[%s319 + $0x60] sm:$0xf] %v368
                  %v370 = vld [vmem:[%s318 + $0x184] sm:$0xf]
                  %371 = vst [vmem:[%s319 + $0x64] sm:$0xf] %v370
                  %v372 = vld [vmem:[%s318 + $0x188] sm:$0xf]
                  %373 = vst [vmem:[%s319 + $0x68] sm:$0xf] %v372
                  %v374 = vld [vmem:[%s318 + $0x18c] sm:$0xf]
                  %375 = vst [vmem:[%s319 + $0x6c] sm:$0xf] %v374
                  %v376 = vld [vmem:[%s318 + $0x190] sm:$0xf]
                  %377 = vst [vmem:[%s319 + $0x70] sm:$0xf] %v376
                  %v378 = vld [vmem:[%s318 + $0x194] sm:$0xf]
                  %379 = vst [vmem:[%s319 + $0x74] sm:$0xf] %v378
                  %v380 = vld [vmem:[%s318 + $0x198] sm:$0xf]
                  %381 = vst [vmem:[%s319 + $0x78] sm:$0xf] %v380
                  %v382 = vld [vmem:[%s318 + $0x19c] sm:$0xf]
                  %383 = vst [vmem:[%s319 + $0x7c] sm:$0xf] %v382
                  %v384 = vld [vmem:[%s318 + $0x200] sm:$0xf]
                  %385 = vst [vmem:[%s319 + $0x80] sm:$0xf] %v384
                  %v386 = vld [vmem:[%s318 + $0x204] sm:$0xf]
                  %387 = vst [vmem:[%s319 + $0x84] sm:$0xf] %v386
                  %v388 = vld [vmem:[%s318 + $0x208] sm:$0xf]
                  %389 = vst [vmem:[%s319 + $0x88] sm:$0xf] %v388
                  %v390 = vld [vmem:[%s318 + $0x20c] sm:$0xf]
                  %391 = vst [vmem:[%s319 + $0x8c] sm:$0xf] %v390
                  %v392 = vld [vmem:[%s318 + $0x210] sm:$0xf]
                  %393 = vst [vmem:[%s319 + $0x90] sm:$0xf] %v392
                  %v394 = vld [vmem:[%s318 + $0x214] sm:$0xf]
                  %395 = vst [vmem:[%s319 + $0x94] sm:$0xf] %v394
                  %v396 = vld [vmem:[%s318 + $0x218] sm:$0xf]
                  %397 = vst [vmem:[%s319 + $0x98] sm:$0xf] %v396
                  %v398 = vld [vmem:[%s318 + $0x21c] sm:$0xf]
                  %399 = vst [vmem:[%s319 + $0x9c] sm:$0xf] %v398
                  %v400 = vld [vmem:[%s318 + $0x280] sm:$0xf]
                  %401 = vst [vmem:[%s319 + $0xa0] sm:$0xf] %v400
                  %v402 = vld [vmem:[%s318 + $0x284] sm:$0xf]
                  %403 = vst [vmem:[%s319 + $0xa4] sm:$0xf] %v402
                  %v404 = vld [vmem:[%s318 + $0x288] sm:$0xf]
                  %405 = vst [vmem:[%s319 + $0xa8] sm:$0xf] %v404
                  %v406 = vld [vmem:[%s318 + $0x28c] sm:$0xf]
                  %407 = vst [vmem:[%s319 + $0xac] sm:$0xf] %v406
                  %v408 = vld [vmem:[%s318 + $0x290] sm:$0xf]
                  %409 = vst [vmem:[%s319 + $0xb0] sm:$0xf] %v408
                  %v410 = vld [vmem:[%s318 + $0x294] sm:$0xf]
                  %411 = vst [vmem:[%s319 + $0xb4] sm:$0xf] %v410
                  %v412 = vld [vmem:[%s318 + $0x298] sm:$0xf]
                  %413 = vst [vmem:[%s319 + $0xb8] sm:$0xf] %v412
                  %v414 = vld [vmem:[%s318 + $0x29c] sm:$0xf]
                  %415 = vst [vmem:[%s319 + $0xbc] sm:$0xf] %v414
                  %v416 = vld [vmem:[%s318 + $0x300] sm:$0xf]
                  %417 = vst [vmem:[%s319 + $0xc0] sm:$0xf] %v416
                  %v418 = vld [vmem:[%s318 + $0x304] sm:$0xf]
                  %419 = vst [vmem:[%s319 + $0xc4] sm:$0xf] %v418
                  %v420 = vld [vmem:[%s318 + $0x308] sm:$0xf]
                  %421 = vst [vmem:[%s319 + $0xc8] sm:$0xf] %v420
                  %v422 = vld [vmem:[%s318 + $0x30c] sm:$0xf]
                  %423 = vst [vmem:[%s319 + $0xcc] sm:$0xf] %v422
                  %v424 = vld [vmem:[%s318 + $0x310] sm:$0xf]
                  %425 = vst [vmem:[%s319 + $0xd0] sm:$0xf] %v424
                  %v426 = vld [vmem:[%s318 + $0x314] sm:$0xf]
                  %427 = vst [vmem:[%s319 + $0xd4] sm:$0xf] %v426
                  %v428 = vld [vmem:[%s318 + $0x318] sm:$0xf]
                  %429 = vst [vmem:[%s319 + $0xd8] sm:$0xf] %v428
                  %v430 = vld [vmem:[%s318 + $0x31c] sm:$0xf]
                  %431 = vst [vmem:[%s319 + $0xdc] sm:$0xf] %v430
                  %v432 = vld [vmem:[%s318 + $0x380] sm:$0xf]
                  %433 = vst [vmem:[%s319 + $0xe0] sm:$0xf] %v432
                  %v434 = vld [vmem:[%s318 + $0x384] sm:$0xf]
                  %435 = vst [vmem:[%s319 + $0xe4] sm:$0xf] %v434
                  %v436 = vld [vmem:[%s318 + $0x388] sm:$0xf]
                  %437 = vst [vmem:[%s319 + $0xe8] sm:$0xf] %v436
                  %v438 = vld [vmem:[%s318 + $0x38c] sm:$0xf]
                  %439 = vst [vmem:[%s319 + $0xec] sm:$0xf] %v438
                  %v440 = vld [vmem:[%s318 + $0x390] sm:$0xf]
                  %441 = vst [vmem:[%s319 + $0xf0] sm:$0xf] %v440
                  %v442 = vld [vmem:[%s318 + $0x394] sm:$0xf]
                  %443 = vst [vmem:[%s319 + $0xf4] sm:$0xf] %v442
                  %v444 = vld [vmem:[%s318 + $0x398] sm:$0xf]
                  %445 = vst [vmem:[%s319 + $0xf8] sm:$0xf] %v444
                  %v446 = vld [vmem:[%s318 + $0x39c] sm:$0xf]
                  %447 = vst [vmem:[%s319 + $0xfc] sm:$0xf] %v446
                $region67: #{ssl_forward.1} parent=54 // loop_footer
                  %s317 = sadd.s32 1, %s313
                $region68: #{ssl_forward.1} parent=54 // loop_footer_branch
                  %312 = sbr.rel target = $region64
                $region69: #{ssl_forward.1} parent=54 // loop_exit
                  _
              $region55: #{ssl_forward.1} parent=39 // pred_fallthru
                _
            $region40: #{ssl_forward.1} parent=35 // pred_fallthru
              _
            // Predicated region
            $region41: #{ssl_forward.1} parent=35 // pred_check
              _
            $region42: #{ssl_forward.1} parent=35 // pred_check_branch
              %163 = sbr.rel (0) target = $region44
            $region43: #{ssl_forward.1} parent=35 // pred_region
              loop: start=0, step=1, limit=1
              $region45: #{ssl_forward.1} parent=43 // loop_pre_header
                _
              $region46: #{ssl_forward.1} parent=43 // loop_header
                %s166 = sphi 0, %s170
                %p167 = scmp.ge.s32.totalorder %s166, 1
                %s171 = sphi %s157, %s157
                %s172 = sphi %s154, %s154
              $region47: #{ssl_forward.1} parent=43 // loop_header_branch
                %169 = sbr.rel (%p167) target = $region51
              $region48: #{ssl_forward.1} parent=43 // loop_body
                %v173 = vld [vmem:[%s171] sm:$0xf]
                %174 = vst [vmem:[%s172] sm:$0xf] %v173
                %v175 = vld [vmem:[%s171 + $0x4] sm:$0xf]
                %176 = vst [vmem:[%s172 + $0x4] sm:$0xf] %v175
                %v177 = vld [vmem:[%s171 + $0x8] sm:$0xf]
                %178 = vst [vmem:[%s172 + $0x8] sm:$0xf] %v177
                %v179 = vld [vmem:[%s171 + $0xc] sm:$0xf]
                %180 = vst [vmem:[%s172 + $0xc] sm:$0xf] %v179
                %v181 = vld [vmem:[%s171 + $0x10] sm:$0xf]
                %182 = vst [vmem:[%s172 + $0x10] sm:$0xf] %v181
                %v183 = vld [vmem:[%s171 + $0x14] sm:$0xf]
                %184 = vst [vmem:[%s172 + $0x14] sm:$0xf] %v183
                %v185 = vld [vmem:[%s171 + $0x18] sm:$0xf]
                %186 = vst [vmem:[%s172 + $0x18] sm:$0xf] %v185
                %v187 = vld [vmem:[%s171 + $0x1c] sm:$0xf]
                %188 = vst [vmem:[%s172 + $0x1c] sm:$0xf] %v187
                %v189 = vld [vmem:[%s171 + $0x80] sm:$0xf]
                %190 = vst [vmem:[%s172 + $0x20] sm:$0xf] %v189
                %v191 = vld [vmem:[%s171 + $0x84] sm:$0xf]
                %192 = vst [vmem:[%s172 + $0x24] sm:$0xf] %v191
                %v193 = vld [vmem:[%s171 + $0x88] sm:$0xf]
                %194 = vst [vmem:[%s172 + $0x28] sm:$0xf] %v193
                %v195 = vld [vmem:[%s171 + $0x8c] sm:$0xf]
                %196 = vst [vmem:[%s172 + $0x2c] sm:$0xf] %v195
                %v197 = vld [vmem:[%s171 + $0x90] sm:$0xf]
                %198 = vst [vmem:[%s172 + $0x30] sm:$0xf] %v197
                %v199 = vld [vmem:[%s171 + $0x94] sm:$0xf]
                %200 = vst [vmem:[%s172 + $0x34] sm:$0xf] %v199
                %v201 = vld [vmem:[%s171 + $0x98] sm:$0xf]
                %202 = vst [vmem:[%s172 + $0x38] sm:$0xf] %v201
                %v203 = vld [vmem:[%s171 + $0x9c] sm:$0xf]
                %204 = vst [vmem:[%s172 + $0x3c] sm:$0xf] %v203
                %v205 = vld [vmem:[%s171 + $0x100] sm:$0xf]
                %206 = vst [vmem:[%s172 + $0x40] sm:$0xf] %v205
                %v207 = vld [vmem:[%s171 + $0x104] sm:$0xf]
                %208 = vst [vmem:[%s172 + $0x44] sm:$0xf] %v207
                %v209 = vld [vmem:[%s171 + $0x108] sm:$0xf]
                %210 = vst [vmem:[%s172 + $0x48] sm:$0xf] %v209
                %v211 = vld [vmem:[%s171 + $0x10c] sm:$0xf]
                %212 = vst [vmem:[%s172 + $0x4c] sm:$0xf] %v211
                %v213 = vld [vmem:[%s171 + $0x110] sm:$0xf]
                %214 = vst [vmem:[%s172 + $0x50] sm:$0xf] %v213
                %v215 = vld [vmem:[%s171 + $0x114] sm:$0xf]
                %216 = vst [vmem:[%s172 + $0x54] sm:$0xf] %v215
                %v217 = vld [vmem:[%s171 + $0x118] sm:$0xf]
                %218 = vst [vmem:[%s172 + $0x58] sm:$0xf] %v217
                %v219 = vld [vmem:[%s171 + $0x11c] sm:$0xf]
                %220 = vst [vmem:[%s172 + $0x5c] sm:$0xf] %v219
                %v221 = vld [vmem:[%s171 + $0x180] sm:$0xf]
                %222 = vst [vmem:[%s172 + $0x60] sm:$0xf] %v221
                %v223 = vld [vmem:[%s171 + $0x184] sm:$0xf]
                %224 = vst [vmem:[%s172 + $0x64] sm:$0xf] %v223
                %v225 = vld [vmem:[%s171 + $0x188] sm:$0xf]
                %226 = vst [vmem:[%s172 + $0x68] sm:$0xf] %v225
                %v227 = vld [vmem:[%s171 + $0x18c] sm:$0xf]
                %228 = vst [vmem:[%s172 + $0x6c] sm:$0xf] %v227
                %v229 = vld [vmem:[%s171 + $0x190] sm:$0xf]
                %230 = vst [vmem:[%s172 + $0x70] sm:$0xf] %v229
                %v231 = vld [vmem:[%s171 + $0x194] sm:$0xf]
                %232 = vst [vmem:[%s172 + $0x74] sm:$0xf] %v231
                %v233 = vld [vmem:[%s171 + $0x198] sm:$0xf]
                %234 = vst [vmem:[%s172 + $0x78] sm:$0xf] %v233
                %v235 = vld [vmem:[%s171 + $0x19c] sm:$0xf]
                %236 = vst [vmem:[%s172 + $0x7c] sm:$0xf] %v235
                %v237 = vld [vmem:[%s171 + $0x200] sm:$0xf]
                %238 = vst [vmem:[%s172 + $0x80] sm:$0xf] %v237
                %v239 = vld [vmem:[%s171 + $0x204] sm:$0xf]
                %240 = vst [vmem:[%s172 + $0x84] sm:$0xf] %v239
                %v241 = vld [vmem:[%s171 + $0x208] sm:$0xf]
                %242 = vst [vmem:[%s172 + $0x88] sm:$0xf] %v241
                %v243 = vld [vmem:[%s171 + $0x20c] sm:$0xf]
                %244 = vst [vmem:[%s172 + $0x8c] sm:$0xf] %v243
                %v245 = vld [vmem:[%s171 + $0x210] sm:$0xf]
                %246 = vst [vmem:[%s172 + $0x90] sm:$0xf] %v245
                %v247 = vld [vmem:[%s171 + $0x214] sm:$0xf]
                %248 = vst [vmem:[%s172 + $0x94] sm:$0xf] %v247
                %v249 = vld [vmem:[%s171 + $0x218] sm:$0xf]
                %250 = vst [vmem:[%s172 + $0x98] sm:$0xf] %v249
                %v251 = vld [vmem:[%s171 + $0x21c] sm:$0xf]
                %252 = vst [vmem:[%s172 + $0x9c] sm:$0xf] %v251
                %v253 = vld [vmem:[%s171 + $0x280] sm:$0xf]
                %254 = vst [vmem:[%s172 + $0xa0] sm:$0xf] %v253
                %v255 = vld [vmem:[%s171 + $0x284] sm:$0xf]
                %256 = vst [vmem:[%s172 + $0xa4] sm:$0xf] %v255
                %v257 = vld [vmem:[%s171 + $0x288] sm:$0xf]
                %258 = vst [vmem:[%s172 + $0xa8] sm:$0xf] %v257
                %v259 = vld [vmem:[%s171 + $0x28c] sm:$0xf]
                %260 = vst [vmem:[%s172 + $0xac] sm:$0xf] %v259
                %v261 = vld [vmem:[%s171 + $0x290] sm:$0xf]
                %262 = vst [vmem:[%s172 + $0xb0] sm:$0xf] %v261
                %v263 = vld [vmem:[%s171 + $0x294] sm:$0xf]
                %264 = vst [vmem:[%s172 + $0xb4] sm:$0xf] %v263
                %v265 = vld [vmem:[%s171 + $0x298] sm:$0xf]
                %266 = vst [vmem:[%s172 + $0xb8] sm:$0xf] %v265
                %v267 = vld [vmem:[%s171 + $0x29c] sm:$0xf]
                %268 = vst [vmem:[%s172 + $0xbc] sm:$0xf] %v267
                %v269 = vld [vmem:[%s171 + $0x300] sm:$0xf]
                %270 = vst [vmem:[%s172 + $0xc0] sm:$0xf] %v269
                %v271 = vld [vmem:[%s171 + $0x304] sm:$0xf]
                %272 = vst [vmem:[%s172 + $0xc4] sm:$0xf] %v271
                %v273 = vld [vmem:[%s171 + $0x308] sm:$0xf]
                %274 = vst [vmem:[%s172 + $0xc8] sm:$0xf] %v273
                %v275 = vld [vmem:[%s171 + $0x30c] sm:$0xf]
                %276 = vst [vmem:[%s172 + $0xcc] sm:$0xf] %v275
                %v277 = vld [vmem:[%s171 + $0x310] sm:$0xf]
                %278 = vst [vmem:[%s172 + $0xd0] sm:$0xf] %v277
                %v279 = vld [vmem:[%s171 + $0x314] sm:$0xf]
                %280 = vst [vmem:[%s172 + $0xd4] sm:$0xf] %v279
                %v281 = vld [vmem:[%s171 + $0x318] sm:$0xf]
                %282 = vst [vmem:[%s172 + $0xd8] sm:$0xf] %v281
                %v283 = vld [vmem:[%s171 + $0x31c] sm:$0xf]
                %284 = vst [vmem:[%s172 + $0xdc] sm:$0xf] %v283
                %v285 = vld [vmem:[%s171 + $0x380] sm:$0xf]
                %286 = vst [vmem:[%s172 + $0xe0] sm:$0xf] %v285
                %v287 = vld [vmem:[%s171 + $0x384] sm:$0xf]
                %288 = vst [vmem:[%s172 + $0xe4] sm:$0xf] %v287
                %v289 = vld [vmem:[%s171 + $0x388] sm:$0xf]
                %290 = vst [vmem:[%s172 + $0xe8] sm:$0xf] %v289
                %v291 = vld [vmem:[%s171 + $0x38c] sm:$0xf]
                %292 = vst [vmem:[%s172 + $0xec] sm:$0xf] %v291
                %v293 = vld [vmem:[%s171 + $0x390] sm:$0xf]
                %294 = vst [vmem:[%s172 + $0xf0] sm:$0xf] %v293
                %v295 = vld [vmem:[%s171 + $0x394] sm:$0xf]
                %296 = vst [vmem:[%s172 + $0xf4] sm:$0xf] %v295
                %v297 = vld [vmem:[%s171 + $0x398] sm:$0xf]
                %298 = vst [vmem:[%s172 + $0xf8] sm:$0xf] %v297
                %v299 = vld [vmem:[%s171 + $0x39c] sm:$0xf]
                %300 = vst [vmem:[%s172 + $0xfc] sm:$0xf] %v299
              $region49: #{ssl_forward.1} parent=43 // loop_footer
                %s170 = sadd.s32 1, %s166
              $region50: #{ssl_forward.1} parent=43 // loop_footer_branch
                %165 = sbr.rel target = $region46
              $region51: #{ssl_forward.1} parent=43 // loop_exit
                _
            $region44: #{ssl_forward.1} parent=35 // pred_fallthru
              _
          $region36: #{ssl_forward.1} parent=31 // pred_fallthru
            _
          %448 = vnop
        $region32: #{ssl_forward.1} parent=27 // pred_fallthru
          _
      $region28: #{ssl_forward.1} parent=5 // pred_fallthru
        _
      %p449 = scmp.le.s32.totalorder 1, %s10
      %p450 = scmp.lt.s32.totalorder %s10, 5
      %p451 = pnand %p449, %p450
      %p452 = pneg %p451
      // Predicated region
      $region70: #{ssl_forward.1} parent=5 // pred_check
        _
      $region71: #{ssl_forward.1} parent=5 // pred_check_branch
        %454 = sbr.rel (%p451) target = $region73
      $region72: #{ssl_forward.1} parent=5 // pred_region
        %s455 = ssub.s32 %s10, 1
        %s456 = sand.u32 %s23, 1
        %s457 = sand.u32 %s23, 1
        %s458 = smul.addr %s457, 256
        %s459 = scalar_lea.vmem [#allocation3], %s458
        // Predicated region
        $region74: #{ssl_forward.1} parent=72 // pred_check
          %p460 = pneg %p36
        $region75: #{ssl_forward.1} parent=72 // pred_check_branch
          %462 = sbr.rel (%p460) target = $region77
        $region76: #{ssl_forward.1} parent=72 // pred_region
          _
        $region77: #{ssl_forward.1} parent=72 // pred_fallthru
          _
        %s463 = sand.u32 %s23, 1
        %s464 = sand.u32 %s23, 1
        %s465 = smul.addr %s464, 256
        %s466 = scalar_lea.vmem [#allocation3], %s465
        %p467 = pneg %p36
        %p468 = pneg %p33
        %p469 = pneg %p57
        %p470 = pneg %p54
        %p471 = pneg %p78
        %p472 = pneg %p75
        %p473 = pneg %p99
        %p474 = pneg %p96
        %p475 = pneg %p120
        %p476 = pneg %p117
        %s477 = smul.u32 8, %s15
        %p479 = scmp.eq.s32.totalorder %s15, 0
        // Predicated region
        $region78: #{ssl_forward.1} parent=72 // pred_check
          %p480 = pneg %p479
        $region79: #{ssl_forward.1} parent=72 // pred_check_branch
          %482 = sbr.rel (%p480) target = $region81
        $region80: #{ssl_forward.1} parent=72 // pred_region
          %483 = vst [vmem:[#allocation2] sm:$0xff] 0.0
          %484 = vst [vmem:[#allocation2 + $0x8] sm:$0xff] 0.0
        $region81: #{ssl_forward.1} parent=72 // pred_fallthru
          _
        %v485 = vld [vmem:[%s459] sm:$0xf]
        %v486 = vld [vmem:[%s459 + $0x4] sm:$0xf]
        %v487 = vld [vmem:[%s459 + $0x8] sm:$0xf]
        %v488 = vld [vmem:[%s459 + $0xc] sm:$0xf]
        %v489 = vld [vmem:[%s459 + $0x10] sm:$0xf]
        %v490 = vld [vmem:[%s459 + $0x14] sm:$0xf]
        %v491 = vld [vmem:[%s459 + $0x18] sm:$0xf]
        %v492 = vld [vmem:[%s459 + $0x1c] sm:$0xf]
        %v493 = vld [vmem:[%s459 + $0x20] sm:$0xf]
        %v494 = vld [vmem:[%s459 + $0x24] sm:$0xf]
        %v495 = vld [vmem:[%s459 + $0x28] sm:$0xf]
        %v496 = vld [vmem:[%s459 + $0x2c] sm:$0xf]
        %v497 = vld [vmem:[%s459 + $0x30] sm:$0xf]
        %v498 = vld [vmem:[%s459 + $0x34] sm:$0xf]
        %v499 = vld [vmem:[%s459 + $0x38] sm:$0xf]
        %v500 = vld [vmem:[%s459 + $0x3c] sm:$0xf]
        %v501 = vld [vmem:[%s459 + $0x40] sm:$0xf]
        %v502 = vld [vmem:[%s459 + $0x44] sm:$0xf]
        %v503 = vld [vmem:[%s459 + $0x48] sm:$0xf]
        %v504 = vld [vmem:[%s459 + $0x4c] sm:$0xf]
        %v505 = vld [vmem:[%s459 + $0x50] sm:$0xf]
        %v506 = vld [vmem:[%s459 + $0x54] sm:$0xf]
        %v507 = vld [vmem:[%s459 + $0x58] sm:$0xf]
        %v508 = vld [vmem:[%s459 + $0x5c] sm:$0xf]
        %v509 = vld [vmem:[%s459 + $0x60] sm:$0xf]
        %v510 = vld [vmem:[%s459 + $0x64] sm:$0xf]
        %v511 = vld [vmem:[%s459 + $0x68] sm:$0xf]
        %v512 = vld [vmem:[%s459 + $0x6c] sm:$0xf]
        %v513 = vld [vmem:[%s459 + $0x70] sm:$0xf]
        %v514 = vld [vmem:[%s459 + $0x74] sm:$0xf]
        %v515 = vld [vmem:[%s459 + $0x78] sm:$0xf]
        %v516 = vld [vmem:[%s459 + $0x7c] sm:$0xf]
        %v517 = vld [vmem:[%s459 + $0x80] sm:$0xf]
        %v518 = vld [vmem:[%s459 + $0x84] sm:$0xf]
        %v519 = vld [vmem:[%s459 + $0x88] sm:$0xf]
        %v520 = vld [vmem:[%s459 + $0x8c] sm:$0xf]
        %v521 = vld [vmem:[%s459 + $0x90] sm:$0xf]
        %v522 = vld [vmem:[%s459 + $0x94] sm:$0xf]
        %v523 = vld [vmem:[%s459 + $0x98] sm:$0xf]
        %v524 = vld [vmem:[%s459 + $0x9c] sm:$0xf]
        %v525 = vld [vmem:[%s459 + $0xa0] sm:$0xf]
        %v526 = vld [vmem:[%s459 + $0xa4] sm:$0xf]
        %v527 = vld [vmem:[%s459 + $0xa8] sm:$0xf]
        %v528 = vld [vmem:[%s459 + $0xac] sm:$0xf]
        %v529 = vld [vmem:[%s459 + $0xb0] sm:$0xf]
        %v530 = vld [vmem:[%s459 + $0xb4] sm:$0xf]
        %v531 = vld [vmem:[%s459 + $0xb8] sm:$0xf]
        %v532 = vld [vmem:[%s459 + $0xbc] sm:$0xf]
        %v533 = vld [vmem:[%s459 + $0xc0] sm:$0xf]
        %v534 = vld [vmem:[%s459 + $0xc4] sm:$0xf]
        %v535 = vld [vmem:[%s459 + $0xc8] sm:$0xf]
        %v536 = vld [vmem:[%s459 + $0xcc] sm:$0xf]
        %v537 = vld [vmem:[%s459 + $0xd0] sm:$0xf]
        %v538 = vld [vmem:[%s459 + $0xd4] sm:$0xf]
        %v539 = vld [vmem:[%s459 + $0xd8] sm:$0xf]
        %v540 = vld [vmem:[%s459 + $0xdc] sm:$0xf]
        %v541 = vld [vmem:[%s459 + $0xe0] sm:$0xf]
        %v542 = vld [vmem:[%s459 + $0xe4] sm:$0xf]
        %v543 = vld [vmem:[%s459 + $0xe8] sm:$0xf]
        %v544 = vld [vmem:[%s459 + $0xec] sm:$0xf]
        %v545 = vld [vmem:[%s459 + $0xf0] sm:$0xf]
        %v546 = vld [vmem:[%s459 + $0xf4] sm:$0xf]
        %v547 = vld [vmem:[%s459 + $0xf8] sm:$0xf]
        %v548 = vld [vmem:[%s459 + $0xfc] sm:$0xf]
        %v549 = vld [vmem:[%s1] sm:$0xff]
        %v550 = vld [vmem:[%s1 + $0x8] sm:$0xff]
        %v551 = vld [vmem:[%s1 + $0x10] sm:$0xff]
        %v552 = vld [vmem:[%s1 + $0x18] sm:$0xff]
        %v617 = vunpack.c.l.b16 %v485
        %v618 = vunpack.c.l.b16 %v486
        %v619 = vunpack.c.l.b16 %v487
        %v620 = vunpack.c.l.b16 %v488
        %v621 = vunpack.c.l.b16 %v489
        %v622 = vunpack.c.l.b16 %v490
        %v623 = vunpack.c.l.b16 %v491
        %v624 = vunpack.c.l.b16 %v492
        %v625 = vunpack.c.l.b16 %v493
        %v626 = vunpack.c.l.b16 %v494
        %v627 = vunpack.c.l.b16 %v495
        %v628 = vunpack.c.l.b16 %v496
        %v629 = vunpack.c.l.b16 %v497
        %v630 = vunpack.c.l.b16 %v498
        %v631 = vunpack.c.l.b16 %v499
        %v632 = vunpack.c.l.b16 %v500
        %v633 = vunpack.c.l.b16 %v501
        %v634 = vunpack.c.l.b16 %v502
        %v635 = vunpack.c.l.b16 %v503
        %v636 = vunpack.c.l.b16 %v504
        %v637 = vunpack.c.l.b16 %v505
        %v638 = vunpack.c.l.b16 %v506
        %v639 = vunpack.c.l.b16 %v507
        %v640 = vunpack.c.l.b16 %v508
        %v641 = vunpack.c.l.b16 %v509
        %v642 = vunpack.c.l.b16 %v510
        %v643 = vunpack.c.l.b16 %v511
        %v644 = vunpack.c.l.b16 %v512
        %v645 = vunpack.c.l.b16 %v513
        %v646 = vunpack.c.l.b16 %v514
        %v647 = vunpack.c.l.b16 %v515
        %v648 = vunpack.c.l.b16 %v516
        %v649 = vunpack.c.l.b16 %v517
        %v650 = vunpack.c.l.b16 %v518
        %v651 = vunpack.c.l.b16 %v519
        %v652 = vunpack.c.l.b16 %v520
        %v653 = vunpack.c.l.b16 %v521
        %v654 = vunpack.c.l.b16 %v522
        %v655 = vunpack.c.l.b16 %v523
        %v656 = vunpack.c.l.b16 %v524
        %v657 = vunpack.c.l.b16 %v525
        %v658 = vunpack.c.l.b16 %v526
        %v659 = vunpack.c.l.b16 %v527
        %v660 = vunpack.c.l.b16 %v528
        %v661 = vunpack.c.l.b16 %v529
        %v662 = vunpack.c.l.b16 %v530
        %v663 = vunpack.c.l.b16 %v531
        %v664 = vunpack.c.l.b16 %v532
        %v665 = vunpack.c.l.b16 %v533
        %v666 = vunpack.c.l.b16 %v534
        %v667 = vunpack.c.l.b16 %v535
        %v668 = vunpack.c.l.b16 %v536
        %v669 = vunpack.c.l.b16 %v537
        %v670 = vunpack.c.l.b16 %v538
        %v671 = vunpack.c.l.b16 %v539
        %v672 = vunpack.c.l.b16 %v540
        %v673 = vunpack.c.l.b16 %v541
        %v674 = vunpack.c.l.b16 %v542
        %v675 = vunpack.c.l.b16 %v543
        %v676 = vunpack.c.l.b16 %v544
        %v677 = vunpack.c.l.b16 %v545
        %v678 = vunpack.c.l.b16 %v546
        %v679 = vunpack.c.l.b16 %v547
        %v680 = vunpack.c.l.b16 %v548
        %v681 = vpack.c.b16 %v618, %v617
        %v682 = vpack.c.b16 %v620, %v619
        %v683 = vpack.c.b16 %v622, %v621
        %v684 = vpack.c.b16 %v624, %v623
        %v685 = vpack.c.b16 %v626, %v625
        %v686 = vpack.c.b16 %v628, %v627
        %v687 = vpack.c.b16 %v630, %v629
        %v688 = vpack.c.b16 %v632, %v631
        %v689 = vpack.c.b16 %v634, %v633
        %v690 = vpack.c.b16 %v636, %v635
        %v691 = vpack.c.b16 %v638, %v637
        %v692 = vpack.c.b16 %v640, %v639
        %v693 = vpack.c.b16 %v642, %v641
        %v694 = vpack.c.b16 %v644, %v643
        %v695 = vpack.c.b16 %v646, %v645
        %v696 = vpack.c.b16 %v648, %v647
        %v697 = vpack.c.b16 %v650, %v649
        %v698 = vpack.c.b16 %v652, %v651
        %v699 = vpack.c.b16 %v654, %v653
        %v700 = vpack.c.b16 %v656, %v655
        %v701 = vpack.c.b16 %v658, %v657
        %v702 = vpack.c.b16 %v660, %v659
        %v703 = vpack.c.b16 %v662, %v661
        %v704 = vpack.c.b16 %v664, %v663
        %v705 = vpack.c.b16 %v666, %v665
        %v706 = vpack.c.b16 %v668, %v667
        %v707 = vpack.c.b16 %v670, %v669
        %v708 = vpack.c.b16 %v672, %v671
        %v709 = vpack.c.b16 %v674, %v673
        %v710 = vpack.c.b16 %v676, %v675
        %v711 = vpack.c.b16 %v678, %v677
        %v712 = vpack.c.b16 %v680, %v679
        %v717 = vunpack.c.l.b16 %v549
        %v718 = vunpack.c.h.b16 %v549
        %v719 = vunpack.c.l.b16 %v550
        %v720 = vunpack.c.h.b16 %v550
        %v721 = vunpack.c.l.b16 %v551
        %v722 = vunpack.c.h.b16 %v551
        %v723 = vunpack.c.l.b16 %v552
        %v724 = vunpack.c.h.b16 %v552
        %v725 = vpack.c.b16 %v719, %v717
        %v726 = vpack.c.b16 %v720, %v718
        %v727 = vpack.c.b16 %v723, %v721
        %v728 = vpack.c.b16 %v724, %v722
        %vm733 = vcmask 261120
        %v735 = vsel %vm733, %v681, 0
        %v738 = vsel %vm733, %v682, 0
        %v741 = vsel %vm733, %v683, 0
        %v744 = vsel %vm733, %v684, 0
        %v747 = vsel %vm733, %v685, 0
        %v750 = vsel %vm733, %v686, 0
        %v753 = vsel %vm733, %v687, 0
        %v756 = vsel %vm733, %v688, 0
        %v759 = vsel %vm733, %v689, 0
        %v762 = vsel %vm733, %v690, 0
        %v765 = vsel %vm733, %v691, 0
        %v768 = vsel %vm733, %v692, 0
        %v771 = vsel %vm733, %v693, 0
        %v774 = vsel %vm733, %v694, 0
        %v777 = vsel %vm733, %v695, 0
        %v780 = vsel %vm733, %v696, 0
        %v783 = vsel %vm733, %v697, 0
        %v786 = vsel %vm733, %v698, 0
        %v789 = vsel %vm733, %v699, 0
        %v792 = vsel %vm733, %v700, 0
        %v795 = vsel %vm733, %v701, 0
        %v798 = vsel %vm733, %v702, 0
        %v801 = vsel %vm733, %v703, 0
        %v804 = vsel %vm733, %v704, 0
        %v807 = vsel %vm733, %v705, 0
        %v810 = vsel %vm733, %v706, 0
        %v813 = vsel %vm733, %v707, 0
        %v816 = vsel %vm733, %v708, 0
        %v819 = vsel %vm733, %v709, 0
        %v822 = vsel %vm733, %v710, 0
        %v825 = vsel %vm733, %v711, 0
        %v828 = vsel %vm733, %v712, 0
        %830 = vmatprep.subr.bf16.mxu0 %v726
        %831 = vmatpush1.bf16.msra.mxu0 %v725
        %832 = vmatprep.subr.bf16.mxu0 %v728
        %833 = vmatpush1.bf16.msra.mxu0 %v727
        %834 = vmatprep.subr.bf16.mxu0 0
        %835 = vmatpush1.bf16.msra.mxu0 0
        %836 = vmatprep.subr.bf16.mxu0 0
        %837 = vmatpush1.bf16.msra.mxu0 0
        %838 = vmatprep.subr.bf16.mxu0 0
        %839 = vmatpush1.bf16.msra.mxu0 0
        %840 = vmatprep.subr.bf16.mxu0 0
        %841 = vmatpush1.bf16.msra.mxu0 0
        %842 = vmatprep.subr.bf16.mxu0 0
        %843 = vmatpush1.bf16.msra.mxu0 0
        %844 = vmatprep.subr.bf16.mxu0 0
        %845 = vmatpush1.bf16.msra.mxu0 0
        %846 = vmatprep.subr.bf16.mxu0 0
        %847 = vmatpush1.bf16.msra.mxu0 0
        %848 = vmatprep.subr.bf16.mxu0 0
        %849 = vmatpush1.bf16.msra.mxu0 0
        %850 = vmatprep.subr.bf16.mxu0 0
        %851 = vmatpush1.bf16.msra.mxu0 0
        %852 = vmatprep.subr.bf16.mxu0 0
        %853 = vmatpush1.bf16.msra.mxu0 0
        %854 = vmatprep.subr.bf16.mxu0 0
        %855 = vmatpush1.bf16.msra.mxu0 0
        %856 = vmatprep.subr.bf16.mxu0 0
        %857 = vmatpush1.bf16.msra.mxu0 0
        %858 = vmatprep.subr.bf16.mxu0 0
        %859 = vmatpush1.bf16.msra.mxu0 0
        %860 = vmatprep.subr.bf16.mxu0 0
        %861 = vmatpush1.bf16.msra.mxu0 0
        %862 = vmatprep.mubr.bf16.mxu0 0
        %863 = vmatmul.mubr.bf16.gmra.mrb[0].mxu0 %v735
        %v864 = vpop.f32.mrb[0].mxu0
        %v865 = vadd.f32 0.0, %v864
        %v866 = vpop.f32.mrb[0].mxu0
        %v867 = vadd.f32 0.0, %v866
        %v868 = vpop.f32.mrb[0].mxu0
        %v869 = vadd.f32 0.0, %v868
        %v870 = vpop.f32.mrb[0].mxu0
        %v871 = vadd.f32 0.0, %v870
        %872 = vmatprep.mubr.bf16.mxu0 0
        %873 = vmatmul.mubr.bf16.gmra.mrb[0].mxu0 %v738
        %v874 = vpop.f32.mrb[0].mxu0
        %v875 = vadd.f32 0.0, %v874
        %v876 = vpop.f32.mrb[0].mxu0
        %v877 = vadd.f32 0.0, %v876
        %v878 = vpop.f32.mrb[0].mxu0
        %v879 = vadd.f32 0.0, %v878
        %v880 = vpop.f32.mrb[0].mxu0
        %v881 = vadd.f32 0.0, %v880
        %882 = vmatprep.mubr.bf16.mxu0 0
        %883 = vmatmul.mubr.bf16.gmra.mrb[0].mxu0 %v741
        %v884 = vpop.f32.mrb[0].mxu0
        %v885 = vadd.f32 0.0, %v884
        %v886 = vpop.f32.mrb[0].mxu0
        %v887 = vadd.f32 0.0, %v886
        %v888 = vpop.f32.mrb[0].mxu0
        %v889 = vadd.f32 0.0, %v888
        %v890 = vpop.f32.mrb[0].mxu0
        %v891 = vadd.f32 0.0, %v890
        %892 = vmatprep.mubr.bf16.mxu0 0
        %893 = vmatmul.mubr.bf16.gmra.mrb[0].mxu0 %v744
        %v894 = vpop.f32.mrb[0].mxu0
        %v895 = vadd.f32 0.0, %v894
        %v896 = vpop.f32.mrb[0].mxu0
        %v897 = vadd.f32 0.0, %v896
        %v898 = vpop.f32.mrb[0].mxu0
        %v899 = vadd.f32 0.0, %v898
        %v900 = vpop.f32.mrb[0].mxu0
        %v901 = vadd.f32 0.0, %v900
        %902 = vmatprep.mubr.bf16.mxu0 0
        %903 = vmatmul.mubr.bf16.gmra.mrb[0].mxu0 %v747
        %v904 = vpop.f32.mrb[0].mxu0
        %v905 = vadd.f32 0.0, %v904
        %v906 = vpop.f32.mrb[0].mxu0
        %v907 = vadd.f32 0.0, %v906
        %v908 = vpop.f32.mrb[0].mxu0
        %v909 = vadd.f32 0.0, %v908
        %v910 = vpop.f32.mrb[0].mxu0
        %v911 = vadd.f32 0.0, %v910
        %912 = vmatprep.mubr.bf16.mxu0 0
        %913 = vmatmul.mubr.bf16.gmra.mrb[0].mxu0 %v750
        %v914 = vpop.f32.mrb[0].mxu0
        %v915 = vadd.f32 0.0, %v914
        %v916 = vpop.f32.mrb[0].mxu0
        %v917 = vadd.f32 0.0, %v916
        %v918 = vpop.f32.mrb[0].mxu0
        %v919 = vadd.f32 0.0, %v918
        %v920 = vpop.f32.mrb[0].mxu0
        %v921 = vadd.f32 0.0, %v920
        %922 = vmatprep.mubr.bf16.mxu0 0
        %923 = vmatmul.mubr.bf16.gmra.mrb[0].mxu0 %v753
        %v924 = vpop.f32.mrb[0].mxu0
        %v925 = vadd.f32 0.0, %v924
        %v926 = vpop.f32.mrb[0].mxu0
        %v927 = vadd.f32 0.0, %v926
        %v928 = vpop.f32.mrb[0].mxu0
        %v929 = vadd.f32 0.0, %v928
        %v930 = vpop.f32.mrb[0].mxu0
        %v931 = vadd.f32 0.0, %v930
        %932 = vmatprep.mubr.bf16.mxu0 0
        %933 = vmatmul.mubr.bf16.gmra.mrb[0].mxu0 %v756
        %v934 = vpop.f32.mrb[0].mxu0
        %v935 = vadd.f32 0.0, %v934
        %v936 = vpop.f32.mrb[0].mxu0
        %v937 = vadd.f32 0.0, %v936
        %v938 = vpop.f32.mrb[0].mxu0
        %v939 = vadd.f32 0.0, %v938
        %v940 = vpop.f32.mrb[0].mxu0
        %v941 = vadd.f32 0.0, %v940
        %942 = vmatprep.mubr.bf16.mxu0 0
        %943 = vmatmul.mubr.bf16.gmra.mrb[0].mxu0 %v759
        %v944 = vpop.f32.mrb[0].mxu0
        %v945 = vadd.f32 0.0, %v944
        %v946 = vpop.f32.mrb[0].mxu0
        %v947 = vadd.f32 0.0, %v946
        %v948 = vpop.f32.mrb[0].mxu0
        %v949 = vadd.f32 0.0, %v948
        %v950 = vpop.f32.mrb[0].mxu0
        %v951 = vadd.f32 0.0, %v950
        %952 = vmatprep.mubr.bf16.mxu0 0
        %953 = vmatmul.mubr.bf16.gmra.mrb[0].mxu0 %v762
        %v954 = vpop.f32.mrb[0].mxu0
        %v955 = vadd.f32 0.0, %v954
        %v956 = vpop.f32.mrb[0].mxu0
        %v957 = vadd.f32 0.0, %v956
        %v958 = vpop.f32.mrb[0].mxu0
        %v959 = vadd.f32 0.0, %v958
        %v960 = vpop.f32.mrb[0].mxu0
        %v961 = vadd.f32 0.0, %v960
        %962 = vmatprep.mubr.bf16.mxu0 0
        %963 = vmatmul.mubr.bf16.gmra.mrb[0].mxu0 %v765
        %v964 = vpop.f32.mrb[0].mxu0
        %v965 = vadd.f32 0.0, %v964
        %v966 = vpop.f32.mrb[0].mxu0
        %v967 = vadd.f32 0.0, %v966
        %v968 = vpop.f32.mrb[0].mxu0
        %v969 = vadd.f32 0.0, %v968
        %v970 = vpop.f32.mrb[0].mxu0
        %v971 = vadd.f32 0.0, %v970
        %972 = vmatprep.mubr.bf16.mxu0 0
        %973 = vmatmul.mubr.bf16.gmra.mrb[0].mxu0 %v768
        %v974 = vpop.f32.mrb[0].mxu0
        %v975 = vadd.f32 0.0, %v974
        %v976 = vpop.f32.mrb[0].mxu0
        %v977 = vadd.f32 0.0, %v976
        %v978 = vpop.f32.mrb[0].mxu0
        %v979 = vadd.f32 0.0, %v978
        %v980 = vpop.f32.mrb[0].mxu0
        %v981 = vadd.f32 0.0, %v980
        %982 = vmatprep.mubr.bf16.mxu0 0
        %983 = vmatmul.mubr.bf16.gmra.mrb[0].mxu0 %v771
        %v984 = vpop.f32.mrb[0].mxu0
        %v985 = vadd.f32 0.0, %v984
        %v986 = vpop.f32.mrb[0].mxu0
        %v987 = vadd.f32 0.0, %v986
        %v988 = vpop.f32.mrb[0].mxu0
        %v989 = vadd.f32 0.0, %v988
        %v990 = vpop.f32.mrb[0].mxu0
        %v991 = vadd.f32 0.0, %v990
        %992 = vmatprep.mubr.bf16.mxu0 0
        %993 = vmatmul.mubr.bf16.gmra.mrb[0].mxu0 %v774
        %v994 = vpop.f32.mrb[0].mxu0
        %v995 = vadd.f32 0.0, %v994
        %v996 = vpop.f32.mrb[0].mxu0
        %v997 = vadd.f32 0.0, %v996
        %v998 = vpop.f32.mrb[0].mxu0
        %v999 = vadd.f32 0.0, %v998
        %v1000 = vpop.f32.mrb[0].mxu0
        %v1001 = vadd.f32 0.0, %v1000
        %1002 = vmatprep.mubr.bf16.mxu0 0
        %1003 = vmatmul.mubr.bf16.gmra.mrb[0].mxu0 %v777
        %v1004 = vpop.f32.mrb[0].mxu0
        %v1005 = vadd.f32 0.0, %v1004
        %v1006 = vpop.f32.mrb[0].mxu0
        %v1007 = vadd.f32 0.0, %v1006
        %v1008 = vpop.f32.mrb[0].mxu0
        %v1009 = vadd.f32 0.0, %v1008
        %v1010 = vpop.f32.mrb[0].mxu0
        %v1011 = vadd.f32 0.0, %v1010
        %1012 = vmatprep.mubr.bf16.mxu0 0
        %1013 = vmatmul.mubr.bf16.gmra.mrb[0].mxu0 %v780
        %v1014 = vpop.f32.mrb[0].mxu0
        %v1015 = vadd.f32 0.0, %v1014
        %v1016 = vpop.f32.mrb[0].mxu0
        %v1017 = vadd.f32 0.0, %v1016
        %v1018 = vpop.f32.mrb[0].mxu0
        %v1019 = vadd.f32 0.0, %v1018
        %v1020 = vpop.f32.mrb[0].mxu0
        %v1021 = vadd.f32 0.0, %v1020
        %1022 = vmatprep.mubr.bf16.mxu0 0
        %1023 = vmatmul.mubr.bf16.gmra.mrb[0].mxu0 %v783
        %v1024 = vpop.f32.mrb[0].mxu0
        %v1025 = vadd.f32 0.0, %v1024
        %v1026 = vpop.f32.mrb[0].mxu0
        %v1027 = vadd.f32 0.0, %v1026
        %v1028 = vpop.f32.mrb[0].mxu0
        %v1029 = vadd.f32 0.0, %v1028
        %v1030 = vpop.f32.mrb[0].mxu0
        %v1031 = vadd.f32 0.0, %v1030
        %1032 = vmatprep.mubr.bf16.mxu0 0
        %1033 = vmatmul.mubr.bf16.gmra.mrb[0].mxu0 %v786
        %v1034 = vpop.f32.mrb[0].mxu0
        %v1035 = vadd.f32 0.0, %v1034
        %v1036 = vpop.f32.mrb[0].mxu0
        %v1037 = vadd.f32 0.0, %v1036
        %v1038 = vpop.f32.mrb[0].mxu0
        %v1039 = vadd.f32 0.0, %v1038
        %v1040 = vpop.f32.mrb[0].mxu0
        %v1041 = vadd.f32 0.0, %v1040
        %1042 = vmatprep.mubr.bf16.mxu0 0
        %1043 = vmatmul.mubr.bf16.gmra.mrb[0].mxu0 %v789
        %v1044 = vpop.f32.mrb[0].mxu0
        %v1045 = vadd.f32 0.0, %v1044
        %v1046 = vpop.f32.mrb[0].mxu0
        %v1047 = vadd.f32 0.0, %v1046
        %v1048 = vpop.f32.mrb[0].mxu0
        %v1049 = vadd.f32 0.0, %v1048
        %v1050 = vpop.f32.mrb[0].mxu0
        %v1051 = vadd.f32 0.0, %v1050
        %1052 = vmatprep.mubr.bf16.mxu0 0
        %1053 = vmatmul.mubr.bf16.gmra.mrb[0].mxu0 %v792
        %v1054 = vpop.f32.mrb[0].mxu0
        %v1055 = vadd.f32 0.0, %v1054
        %v1056 = vpop.f32.mrb[0].mxu0
        %v1057 = vadd.f32 0.0, %v1056
        %v1058 = vpop.f32.mrb[0].mxu0
        %v1059 = vadd.f32 0.0, %v1058
        %v1060 = vpop.f32.mrb[0].mxu0
        %v1061 = vadd.f32 0.0, %v1060
        %1062 = vmatprep.mubr.bf16.mxu0 0
        %1063 = vmatmul.mubr.bf16.gmra.mrb[0].mxu0 %v795
        %v1064 = vpop.f32.mrb[0].mxu0
        %v1065 = vadd.f32 0.0, %v1064
        %v1066 = vpop.f32.mrb[0].mxu0
        %v1067 = vadd.f32 0.0, %v1066
        %v1068 = vpop.f32.mrb[0].mxu0
        %v1069 = vadd.f32 0.0, %v1068
        %v1070 = vpop.f32.mrb[0].mxu0
        %v1071 = vadd.f32 0.0, %v1070
        %1072 = vmatprep.mubr.bf16.mxu0 0
        %1073 = vmatmul.mubr.bf16.gmra.mrb[0].mxu0 %v798
        %v1074 = vpop.f32.mrb[0].mxu0
        %v1075 = vadd.f32 0.0, %v1074
        %v1076 = vpop.f32.mrb[0].mxu0
        %v1077 = vadd.f32 0.0, %v1076
        %v1078 = vpop.f32.mrb[0].mxu0
        %v1079 = vadd.f32 0.0, %v1078
        %v1080 = vpop.f32.mrb[0].mxu0
        %v1081 = vadd.f32 0.0, %v1080
        %1082 = vmatprep.mubr.bf16.mxu0 0
        %1083 = vmatmul.mubr.bf16.gmra.mrb[0].mxu0 %v801
        %v1084 = vpop.f32.mrb[0].mxu0
        %v1085 = vadd.f32 0.0, %v1084
        %v1086 = vpop.f32.mrb[0].mxu0
        %v1087 = vadd.f32 0.0, %v1086
        %v1088 = vpop.f32.mrb[0].mxu0
        %v1089 = vadd.f32 0.0, %v1088
        %v1090 = vpop.f32.mrb[0].mxu0
        %v1091 = vadd.f32 0.0, %v1090
        %1092 = vmatprep.mubr.bf16.mxu0 0
        %1093 = vmatmul.mubr.bf16.gmra.mrb[0].mxu0 %v804
        %v1094 = vpop.f32.mrb[0].mxu0
        %v1095 = vadd.f32 0.0, %v1094
        %v1096 = vpop.f32.mrb[0].mxu0
        %v1097 = vadd.f32 0.0, %v1096
        %v1098 = vpop.f32.mrb[0].mxu0
        %v1099 = vadd.f32 0.0, %v1098
        %v1100 = vpop.f32.mrb[0].mxu0
        %v1101 = vadd.f32 0.0, %v1100
        %1102 = vmatprep.mubr.bf16.mxu0 0
        %1103 = vmatmul.mubr.bf16.gmra.mrb[0].mxu0 %v807
        %v1104 = vpop.f32.mrb[0].mxu0
        %v1105 = vadd.f32 0.0, %v1104
        %v1106 = vpop.f32.mrb[0].mxu0
        %v1107 = vadd.f32 0.0, %v1106
        %v1108 = vpop.f32.mrb[0].mxu0
        %v1109 = vadd.f32 0.0, %v1108
        %v1110 = vpop.f32.mrb[0].mxu0
        %v1111 = vadd.f32 0.0, %v1110
        %1112 = vmatprep.mubr.bf16.mxu0 0
        %1113 = vmatmul.mubr.bf16.gmra.mrb[0].mxu0 %v810
        %v1114 = vpop.f32.mrb[0].mxu0
        %v1115 = vadd.f32 0.0, %v1114
        %v1116 = vpop.f32.mrb[0].mxu0
        %v1117 = vadd.f32 0.0, %v1116
        %v1118 = vpop.f32.mrb[0].mxu0
        %v1119 = vadd.f32 0.0, %v1118
        %v1120 = vpop.f32.mrb[0].mxu0
        %v1121 = vadd.f32 0.0, %v1120
        %1122 = vmatprep.mubr.bf16.mxu0 0
        %1123 = vmatmul.mubr.bf16.gmra.mrb[0].mxu0 %v813
        %v1124 = vpop.f32.mrb[0].mxu0
        %v1125 = vadd.f32 0.0, %v1124
        %v1126 = vpop.f32.mrb[0].mxu0
        %v1127 = vadd.f32 0.0, %v1126
        %v1128 = vpop.f32.mrb[0].mxu0
        %v1129 = vadd.f32 0.0, %v1128
        %v1130 = vpop.f32.mrb[0].mxu0
        %v1131 = vadd.f32 0.0, %v1130
        %1132 = vmatprep.mubr.bf16.mxu0 0
        %1133 = vmatmul.mubr.bf16.gmra.mrb[0].mxu0 %v816
        %v1134 = vpop.f32.mrb[0].mxu0
        %v1135 = vadd.f32 0.0, %v1134
        %v1136 = vpop.f32.mrb[0].mxu0
        %v1137 = vadd.f32 0.0, %v1136
        %v1138 = vpop.f32.mrb[0].mxu0
        %v1139 = vadd.f32 0.0, %v1138
        %v1140 = vpop.f32.mrb[0].mxu0
        %v1141 = vadd.f32 0.0, %v1140
        %1142 = vmatprep.mubr.bf16.mxu0 0
        %1143 = vmatmul.mubr.bf16.gmra.mrb[0].mxu0 %v819
        %v1144 = vpop.f32.mrb[0].mxu0
        %v1145 = vadd.f32 0.0, %v1144
        %v1146 = vpop.f32.mrb[0].mxu0
        %v1147 = vadd.f32 0.0, %v1146
        %v1148 = vpop.f32.mrb[0].mxu0
        %v1149 = vadd.f32 0.0, %v1148
        %v1150 = vpop.f32.mrb[0].mxu0
        %v1151 = vadd.f32 0.0, %v1150
        %1152 = vmatprep.mubr.bf16.mxu0 0
        %1153 = vmatmul.mubr.bf16.gmra.mrb[0].mxu0 %v822
        %v1154 = vpop.f32.mrb[0].mxu0
        %v1155 = vadd.f32 0.0, %v1154
        %v1156 = vpop.f32.mrb[0].mxu0
        %v1157 = vadd.f32 0.0, %v1156
        %v1158 = vpop.f32.mrb[0].mxu0
        %v1159 = vadd.f32 0.0, %v1158
        %v1160 = vpop.f32.mrb[0].mxu0
        %v1161 = vadd.f32 0.0, %v1160
        %1162 = vmatprep.mubr.bf16.mxu0 0
        %1163 = vmatmul.mubr.bf16.gmra.mrb[0].mxu0 %v825
        %v1164 = vpop.f32.mrb[0].mxu0
        %v1165 = vadd.f32 0.0, %v1164
        %v1166 = vpop.f32.mrb[0].mxu0
        %v1167 = vadd.f32 0.0, %v1166
        %v1168 = vpop.f32.mrb[0].mxu0
        %v1169 = vadd.f32 0.0, %v1168
        %v1170 = vpop.f32.mrb[0].mxu0
        %v1171 = vadd.f32 0.0, %v1170
        %1172 = vmatprep.mubr.bf16.mxu0 0
        %1173 = vmatmul.mubr.bf16.gmra.mrb[0].mxu0 %v828
        %v1174 = vpop.f32.mrb[0].mxu0
        %v1175 = vadd.f32 0.0, %v1174
        %v1176 = vpop.f32.mrb[0].mxu0
        %v1177 = vadd.f32 0.0, %v1176
        %v1178 = vpop.f32.mrb[0].mxu0
        %v1179 = vadd.f32 0.0, %v1178
        %v1180 = vpop.f32.mrb[0].mxu0
        %v1181 = vadd.f32 0.0, %v1180
        %1182 = vdwg.mxu0
        %v1183 = vmax.f32 %v865, 0.0
        %v1184 = vmax.f32 %v867, 0.0
        %v1185 = vmax.f32 %v869, 0.0
        %v1186 = vmax.f32 %v871, 0.0
        %v1187 = vmax.f32 %v875, 0.0
        %v1188 = vmax.f32 %v877, 0.0
        %v1189 = vmax.f32 %v879, 0.0
        %v1190 = vmax.f32 %v881, 0.0
        %v1191 = vmax.f32 %v885, 0.0
        %v1192 = vmax.f32 %v887, 0.0
        %v1193 = vmax.f32 %v889, 0.0
        %v1194 = vmax.f32 %v891, 0.0
        %v1195 = vmax.f32 %v895, 0.0
        %v1196 = vmax.f32 %v897, 0.0
        %v1197 = vmax.f32 %v899, 0.0
        %v1198 = vmax.f32 %v901, 0.0
        %v1199 = vmax.f32 %v905, 0.0
        %v1200 = vmax.f32 %v907, 0.0
        %v1201 = vmax.f32 %v909, 0.0
        %v1202 = vmax.f32 %v911, 0.0
        %v1203 = vmax.f32 %v915, 0.0
        %v1204 = vmax.f32 %v917, 0.0
        %v1205 = vmax.f32 %v919, 0.0
        %v1206 = vmax.f32 %v921, 0.0
        %v1207 = vmax.f32 %v925, 0.0
        %v1208 = vmax.f32 %v927, 0.0
        %v1209 = vmax.f32 %v929, 0.0
        %v1210 = vmax.f32 %v931, 0.0
        %v1211 = vmax.f32 %v935, 0.0
        %v1212 = vmax.f32 %v937, 0.0
        %v1213 = vmax.f32 %v939, 0.0
        %v1214 = vmax.f32 %v941, 0.0
        %v1215 = vmax.f32 %v945, 0.0
        %v1216 = vmax.f32 %v947, 0.0
        %v1217 = vmax.f32 %v949, 0.0
        %v1218 = vmax.f32 %v951, 0.0
        %v1219 = vmax.f32 %v955, 0.0
        %v1220 = vmax.f32 %v957, 0.0
        %v1221 = vmax.f32 %v959, 0.0
        %v1222 = vmax.f32 %v961, 0.0
        %v1223 = vmax.f32 %v965, 0.0
        %v1224 = vmax.f32 %v967, 0.0
        %v1225 = vmax.f32 %v969, 0.0
        %v1226 = vmax.f32 %v971, 0.0
        %v1227 = vmax.f32 %v975, 0.0
        %v1228 = vmax.f32 %v977, 0.0
        %v1229 = vmax.f32 %v979, 0.0
        %v1230 = vmax.f32 %v981, 0.0
        %v1231 = vmax.f32 %v985, 0.0
        %v1232 = vmax.f32 %v987, 0.0
        %v1233 = vmax.f32 %v989, 0.0
        %v1234 = vmax.f32 %v991, 0.0
        %v1235 = vmax.f32 %v995, 0.0
        %v1236 = vmax.f32 %v997, 0.0
        %v1237 = vmax.f32 %v999, 0.0
        %v1238 = vmax.f32 %v1001, 0.0
        %v1239 = vmax.f32 %v1005, 0.0
        %v1240 = vmax.f32 %v1007, 0.0
        %v1241 = vmax.f32 %v1009, 0.0
        %v1242 = vmax.f32 %v1011, 0.0
        %v1243 = vmax.f32 %v1015, 0.0
        %v1244 = vmax.f32 %v1017, 0.0
        %v1245 = vmax.f32 %v1019, 0.0
        %v1246 = vmax.f32 %v1021, 0.0
        %v1247 = vmax.f32 %v1025, 0.0
        %v1248 = vmax.f32 %v1027, 0.0
        %v1249 = vmax.f32 %v1029, 0.0
        %v1250 = vmax.f32 %v1031, 0.0
        %v1251 = vmax.f32 %v1035, 0.0
        %v1252 = vmax.f32 %v1037, 0.0
        %v1253 = vmax.f32 %v1039, 0.0
        %v1254 = vmax.f32 %v1041, 0.0
        %v1255 = vmax.f32 %v1045, 0.0
        %v1256 = vmax.f32 %v1047, 0.0
        %v1257 = vmax.f32 %v1049, 0.0
        %v1258 = vmax.f32 %v1051, 0.0
        %v1259 = vmax.f32 %v1055, 0.0
        %v1260 = vmax.f32 %v1057, 0.0
        %v1261 = vmax.f32 %v1059, 0.0
        %v1262 = vmax.f32 %v1061, 0.0
        %v1263 = vmax.f32 %v1065, 0.0
        %v1264 = vmax.f32 %v1067, 0.0
        %v1265 = vmax.f32 %v1069, 0.0
        %v1266 = vmax.f32 %v1071, 0.0
        %v1267 = vmax.f32 %v1075, 0.0
        %v1268 = vmax.f32 %v1077, 0.0
        %v1269 = vmax.f32 %v1079, 0.0
        %v1270 = vmax.f32 %v1081, 0.0
        %v1271 = vmax.f32 %v1085, 0.0
        %v1272 = vmax.f32 %v1087, 0.0
        %v1273 = vmax.f32 %v1089, 0.0
        %v1274 = vmax.f32 %v1091, 0.0
        %v1275 = vmax.f32 %v1095, 0.0
        %v1276 = vmax.f32 %v1097, 0.0
        %v1277 = vmax.f32 %v1099, 0.0
        %v1278 = vmax.f32 %v1101, 0.0
        %v1279 = vmax.f32 %v1105, 0.0
        %v1280 = vmax.f32 %v1107, 0.0
        %v1281 = vmax.f32 %v1109, 0.0
        %v1282 = vmax.f32 %v1111, 0.0
        %v1283 = vmax.f32 %v1115, 0.0
        %v1284 = vmax.f32 %v1117, 0.0
        %v1285 = vmax.f32 %v1119, 0.0
        %v1286 = vmax.f32 %v1121, 0.0
        %v1287 = vmax.f32 %v1125, 0.0
        %v1288 = vmax.f32 %v1127, 0.0
        %v1289 = vmax.f32 %v1129, 0.0
        %v1290 = vmax.f32 %v1131, 0.0
        %v1291 = vmax.f32 %v1135, 0.0
        %v1292 = vmax.f32 %v1137, 0.0
        %v1293 = vmax.f32 %v1139, 0.0
        %v1294 = vmax.f32 %v1141, 0.0
        %v1295 = vmax.f32 %v1145, 0.0
        %v1296 = vmax.f32 %v1147, 0.0
        %v1297 = vmax.f32 %v1149, 0.0
        %v1298 = vmax.f32 %v1151, 0.0
        %v1299 = vmax.f32 %v1155, 0.0
        %v1300 = vmax.f32 %v1157, 0.0
        %v1301 = vmax.f32 %v1159, 0.0
        %v1302 = vmax.f32 %v1161, 0.0
        %v1303 = vmax.f32 %v1165, 0.0
        %v1304 = vmax.f32 %v1167, 0.0
        %v1305 = vmax.f32 %v1169, 0.0
        %v1306 = vmax.f32 %v1171, 0.0
        %v1307 = vmax.f32 %v1175, 0.0
        %v1308 = vmax.f32 %v1177, 0.0
        %v1309 = vmax.f32 %v1179, 0.0
        %v1310 = vmax.f32 %v1181, 0.0
        %v1311 = vld [vmem:[#allocation2] sm:$0xff]
        %v1312 = vld [vmem:[#allocation2 + $0x8] sm:$0xff]
        %v1313 = vadd.f32 %v1183, %v1185
        %v1314 = vadd.f32 %v1313, %v1187
        %v1315 = vadd.f32 %v1314, %v1189
        %v1316 = vadd.f32 %v1315, %v1191
        %v1317 = vadd.f32 %v1316, %v1193
        %v1318 = vadd.f32 %v1317, %v1195
        %v1319 = vadd.f32 %v1318, %v1197
        %v1320 = vrot.slane %v1319, 4
        %v1321 = vadd.f32 %v1319, %v1320
        %v1322 = vrot.slane %v1321, 2
        %v1323 = vadd.f32 %v1321, %v1322
        %v1324 = vrot.slane %v1323, 1
        %v1325 = vadd.f32 %v1323, %v1324
        %v1326 = vadd.f32 %v1184, %v1186
        %v1327 = vadd.f32 %v1326, %v1188
        %v1328 = vadd.f32 %v1327, %v1190
        %v1329 = vadd.f32 %v1328, %v1192
        %v1330 = vadd.f32 %v1329, %v1194
        %v1331 = vadd.f32 %v1330, %v1196
        %v1332 = vadd.f32 %v1331, %v1198
        %v1333 = vrot.slane %v1332, 4
        %v1334 = vadd.f32 %v1332, %v1333
        %v1335 = vrot.slane %v1334, 2
        %v1336 = vadd.f32 %v1334, %v1335
        %v1337 = vrot.slane %v1336, 1
        %v1338 = vadd.f32 %v1336, %v1337
        %v1339 = vadd.f32 %v1199, %v1201
        %v1340 = vadd.f32 %v1339, %v1203
        %v1341 = vadd.f32 %v1340, %v1205
        %v1342 = vadd.f32 %v1341, %v1207
        %v1343 = vadd.f32 %v1342, %v1209
        %v1344 = vadd.f32 %v1343, %v1211
        %v1345 = vadd.f32 %v1344, %v1213
        %v1346 = vrot.slane %v1345, 4
        %v1347 = vadd.f32 %v1345, %v1346
        %v1348 = vrot.slane %v1347, 2
        %v1349 = vadd.f32 %v1347, %v1348
        %v1350 = vrot.slane %v1349, 1
        %v1351 = vadd.f32 %v1349, %v1350
        %v1352 = vadd.f32 %v1200, %v1202
        %v1353 = vadd.f32 %v1352, %v1204
        %v1354 = vadd.f32 %v1353, %v1206
        %v1355 = vadd.f32 %v1354, %v1208
        %v1356 = vadd.f32 %v1355, %v1210
        %v1357 = vadd.f32 %v1356, %v1212
        %v1358 = vadd.f32 %v1357, %v1214
        %v1359 = vrot.slane %v1358, 4
        %v1360 = vadd.f32 %v1358, %v1359
        %v1361 = vrot.slane %v1360, 2
        %v1362 = vadd.f32 %v1360, %v1361
        %v1363 = vrot.slane %v1362, 1
        %v1364 = vadd.f32 %v1362, %v1363
        %v1365 = vadd.f32 %v1215, %v1217
        %v1366 = vadd.f32 %v1365, %v1219
        %v1367 = vadd.f32 %v1366, %v1221
        %v1368 = vadd.f32 %v1367, %v1223
        %v1369 = vadd.f32 %v1368, %v1225
        %v1370 = vadd.f32 %v1369, %v1227
        %v1371 = vadd.f32 %v1370, %v1229
        %v1372 = vrot.slane %v1371, 4
        %v1373 = vadd.f32 %v1371, %v1372
        %v1374 = vrot.slane %v1373, 2
        %v1375 = vadd.f32 %v1373, %v1374
        %v1376 = vrot.slane %v1375, 1
        %v1377 = vadd.f32 %v1375, %v1376
        %v1378 = vadd.f32 %v1216, %v1218
        %v1379 = vadd.f32 %v1378, %v1220
        %v1380 = vadd.f32 %v1379, %v1222
        %v1381 = vadd.f32 %v1380, %v1224
        %v1382 = vadd.f32 %v1381, %v1226
        %v1383 = vadd.f32 %v1382, %v1228
        %v1384 = vadd.f32 %v1383, %v1230
        %v1385 = vrot.slane %v1384, 4
        %v1386 = vadd.f32 %v1384, %v1385
        %v1387 = vrot.slane %v1386, 2
        %v1388 = vadd.f32 %v1386, %v1387
        %v1389 = vrot.slane %v1388, 1
        %v1390 = vadd.f32 %v1388, %v1389
        %v1391 = vadd.f32 %v1231, %v1233
        %v1392 = vadd.f32 %v1391, %v1235
        %v1393 = vadd.f32 %v1392, %v1237
        %v1394 = vadd.f32 %v1393, %v1239
        %v1395 = vadd.f32 %v1394, %v1241
        %v1396 = vadd.f32 %v1395, %v1243
        %v1397 = vadd.f32 %v1396, %v1245
        %v1398 = vrot.slane %v1397, 4
        %v1399 = vadd.f32 %v1397, %v1398
        %v1400 = vrot.slane %v1399, 2
        %v1401 = vadd.f32 %v1399, %v1400
        %v1402 = vrot.slane %v1401, 1
        %v1403 = vadd.f32 %v1401, %v1402
        %v1404 = vadd.f32 %v1232, %v1234
        %v1405 = vadd.f32 %v1404, %v1236
        %v1406 = vadd.f32 %v1405, %v1238
        %v1407 = vadd.f32 %v1406, %v1240
        %v1408 = vadd.f32 %v1407, %v1242
        %v1409 = vadd.f32 %v1408, %v1244
        %v1410 = vadd.f32 %v1409, %v1246
        %v1411 = vrot.slane %v1410, 4
        %v1412 = vadd.f32 %v1410, %v1411
        %v1413 = vrot.slane %v1412, 2
        %v1414 = vadd.f32 %v1412, %v1413
        %v1415 = vrot.slane %v1414, 1
        %v1416 = vadd.f32 %v1414, %v1415
        %v1417 = vadd.f32 %v1247, %v1249
        %v1418 = vadd.f32 %v1417, %v1251
        %v1419 = vadd.f32 %v1418, %v1253
        %v1420 = vadd.f32 %v1419, %v1255
        %v1421 = vadd.f32 %v1420, %v1257
        %v1422 = vadd.f32 %v1421, %v1259
        %v1423 = vadd.f32 %v1422, %v1261
        %v1424 = vrot.slane %v1423, 4
        %v1425 = vadd.f32 %v1423, %v1424
        %v1426 = vrot.slane %v1425, 2
        %v1427 = vadd.f32 %v1425, %v1426
        %v1428 = vrot.slane %v1427, 1
        %v1429 = vadd.f32 %v1427, %v1428
        %v1430 = vadd.f32 %v1248, %v1250
        %v1431 = vadd.f32 %v1430, %v1252
        %v1432 = vadd.f32 %v1431, %v1254
        %v1433 = vadd.f32 %v1432, %v1256
        %v1434 = vadd.f32 %v1433, %v1258
        %v1435 = vadd.f32 %v1434, %v1260
        %v1436 = vadd.f32 %v1435, %v1262
        %v1437 = vrot.slane %v1436, 4
        %v1438 = vadd.f32 %v1436, %v1437
        %v1439 = vrot.slane %v1438, 2
        %v1440 = vadd.f32 %v1438, %v1439
        %v1441 = vrot.slane %v1440, 1
        %v1442 = vadd.f32 %v1440, %v1441
        %v1443 = vadd.f32 %v1263, %v1265
        %v1444 = vadd.f32 %v1443, %v1267
        %v1445 = vadd.f32 %v1444, %v1269
        %v1446 = vadd.f32 %v1445, %v1271
        %v1447 = vadd.f32 %v1446, %v1273
        %v1448 = vadd.f32 %v1447, %v1275
        %v1449 = vadd.f32 %v1448, %v1277
        %v1450 = vrot.slane %v1449, 4
        %v1451 = vadd.f32 %v1449, %v1450
        %v1452 = vrot.slane %v1451, 2
        %v1453 = vadd.f32 %v1451, %v1452
        %v1454 = vrot.slane %v1453, 1
        %v1455 = vadd.f32 %v1453, %v1454
        %v1456 = vadd.f32 %v1264, %v1266
        %v1457 = vadd.f32 %v1456, %v1268
        %v1458 = vadd.f32 %v1457, %v1270
        %v1459 = vadd.f32 %v1458, %v1272
        %v1460 = vadd.f32 %v1459, %v1274
        %v1461 = vadd.f32 %v1460, %v1276
        %v1462 = vadd.f32 %v1461, %v1278
        %v1463 = vrot.slane %v1462, 4
        %v1464 = vadd.f32 %v1462, %v1463
        %v1465 = vrot.slane %v1464, 2
        %v1466 = vadd.f32 %v1464, %v1465
        %v1467 = vrot.slane %v1466, 1
        %v1468 = vadd.f32 %v1466, %v1467
        %v1469 = vadd.f32 %v1279, %v1281
        %v1470 = vadd.f32 %v1469, %v1283
        %v1471 = vadd.f32 %v1470, %v1285
        %v1472 = vadd.f32 %v1471, %v1287
        %v1473 = vadd.f32 %v1472, %v1289
        %v1474 = vadd.f32 %v1473, %v1291
        %v1475 = vadd.f32 %v1474, %v1293
        %v1476 = vrot.slane %v1475, 4
        %v1477 = vadd.f32 %v1475, %v1476
        %v1478 = vrot.slane %v1477, 2
        %v1479 = vadd.f32 %v1477, %v1478
        %v1480 = vrot.slane %v1479, 1
        %v1481 = vadd.f32 %v1479, %v1480
        %v1482 = vadd.f32 %v1280, %v1282
        %v1483 = vadd.f32 %v1482, %v1284
        %v1484 = vadd.f32 %v1483, %v1286
        %v1485 = vadd.f32 %v1484, %v1288
        %v1486 = vadd.f32 %v1485, %v1290
        %v1487 = vadd.f32 %v1486, %v1292
        %v1488 = vadd.f32 %v1487, %v1294
        %v1489 = vrot.slane %v1488, 4
        %v1490 = vadd.f32 %v1488, %v1489
        %v1491 = vrot.slane %v1490, 2
        %v1492 = vadd.f32 %v1490, %v1491
        %v1493 = vrot.slane %v1492, 1
        %v1494 = vadd.f32 %v1492, %v1493
        %v1495 = vadd.f32 %v1295, %v1297
        %v1496 = vadd.f32 %v1495, %v1299
        %v1497 = vadd.f32 %v1496, %v1301
        %v1498 = vadd.f32 %v1497, %v1303
        %v1499 = vadd.f32 %v1498, %v1305
        %v1500 = vadd.f32 %v1499, %v1307
        %v1501 = vadd.f32 %v1500, %v1309
        %v1502 = vrot.slane %v1501, 4
        %v1503 = vadd.f32 %v1501, %v1502
        %v1504 = vrot.slane %v1503, 2
        %v1505 = vadd.f32 %v1503, %v1504
        %v1506 = vrot.slane %v1505, 1
        %v1507 = vadd.f32 %v1505, %v1506
        %v1508 = vadd.f32 %v1296, %v1298
        %v1509 = vadd.f32 %v1508, %v1300
        %v1510 = vadd.f32 %v1509, %v1302
        %v1511 = vadd.f32 %v1510, %v1304
        %v1512 = vadd.f32 %v1511, %v1306
        %v1513 = vadd.f32 %v1512, %v1308
        %v1514 = vadd.f32 %v1513, %v1310
        %v1515 = vrot.slane %v1514, 4
        %v1516 = vadd.f32 %v1514, %v1515
        %v1517 = vrot.slane %v1516, 2
        %v1518 = vadd.f32 %v1516, %v1517
        %v1519 = vrot.slane %v1518, 1
        %v1520 = vadd.f32 %v1518, %v1519
        %vm1537 = vcmask 1041409
        %v1538 = vsel %vm1537, %v1351, %v1325
        %vm1539 = vcmask 1042434
        %v1540 = vsel %vm1539, %v1377, %v1538
        %vm1541 = vcmask 1043459
        %v1542 = vsel %vm1541, %v1403, %v1540
        %vm1543 = vcmask 1044484
        %v1544 = vsel %vm1543, %v1429, %v1542
        %vm1545 = vcmask 1045509
        %v1546 = vsel %vm1545, %v1455, %v1544
        %vm1547 = vcmask 1046534
        %v1548 = vsel %vm1547, %v1481, %v1546
        %vm1549 = vcmask 1047559
        %v1550 = vsel %vm1549, %v1507, %v1548
        %v1551 = vsel %vm1537, %v1364, %v1338
        %v1552 = vsel %vm1539, %v1390, %v1551
        %v1553 = vsel %vm1541, %v1416, %v1552
        %v1554 = vsel %vm1543, %v1442, %v1553
        %v1555 = vsel %vm1545, %v1468, %v1554
        %v1556 = vsel %vm1547, %v1494, %v1555
        %v1557 = vsel %vm1549, %v1520, %v1556
        %v1560 = vadd.f32 %v1311, %v1550
        %v1561 = vadd.f32 %v1312, %v1557
        %1562 = vst [vmem:[#allocation2] sm:$0xff] %v1560
        %1563 = vst [vmem:[#allocation2 + $0x8] sm:$0xff] %v1561
        %p1564 = scmp.eq.s32.totalorder %s15, 3
        // Predicated region
        $region82: #{ssl_forward.1} parent=72 // pred_check
          %p1565 = pneg %p1564
        $region83: #{ssl_forward.1} parent=72 // pred_check_branch
          %1567 = sbr.rel (%p1565) target = $region85
        $region84: #{ssl_forward.1} parent=72 // pred_region
          %v1568 = vld [vmem:[%s3] sm:$0x1]
          %v1569 = vld [vmem:[%s3 + $0x1] sm:$0x1]
          %v1570 = vld [vmem:[%s3 + $0x2] sm:$0x1]
          %v1571 = vld [vmem:[#allocation2] sm:$0xff]
          %v1572 = vld [vmem:[#allocation2 + $0x8] sm:$0xff]
          %v1573 = vld [vmem:[%s2] sm:$0xff]
          %v1574 = vld [vmem:[%s2 + $0x8] sm:$0xff]
          %v1575 = vld [vmem:[%s2 + $0x10] sm:$0xff]
          %v1576 = vld [vmem:[%s2 + $0x18] sm:$0xff]
          %v1577 = vld [vmem:[%s2 + $0x20] sm:$0xff]
          %v1578 = vld [vmem:[%s2 + $0x28] sm:$0xff]
          %v1579 = vld [vmem:[%s2 + $0x30] sm:$0xff]
          %v1580 = vld [vmem:[%s2 + $0x38] sm:$0xff]
          %v1581 = vld [vmem:[%s2 + $0x40] sm:$0xff]
          %v1582 = vld [vmem:[%s2 + $0x48] sm:$0xff]
          %v1583 = vld [vmem:[%s2 + $0x50] sm:$0xff]
          %v1584 = vld [vmem:[%s2 + $0x58] sm:$0xff]
          %v1585 = vld [vmem:[%s2 + $0x60] sm:$0xff]
          %v1586 = vld [vmem:[%s2 + $0x68] sm:$0xff]
          %v1587 = vld [vmem:[%s2 + $0x70] sm:$0xff]
          %v1588 = vld [vmem:[%s2 + $0x78] sm:$0xff]
          %v1589 = vld [vmem:[%s2 + $0x80] sm:$0xff]
          %v1590 = vld [vmem:[%s2 + $0x88] sm:$0xff]
          %v1591 = vld [vmem:[%s2 + $0x90] sm:$0xff]
          %v1592 = vld [vmem:[%s2 + $0x98] sm:$0xff]
          %v1593 = vld [vmem:[%s2 + $0xa0] sm:$0xff]
          %v1594 = vld [vmem:[%s2 + $0xa8] sm:$0xff]
          %v1595 = vld [vmem:[%s2 + $0xb0] sm:$0xff]
          %v1596 = vld [vmem:[%s2 + $0xb8] sm:$0xff]
          %v1597 = vld [vmem:[%s2 + $0xc0] sm:$0xff]
          %v1598 = vld [vmem:[%s2 + $0xc8] sm:$0xff]
          %v1599 = vld [vmem:[%s2 + $0xd0] sm:$0xff]
          %v1600 = vld [vmem:[%s2 + $0xd8] sm:$0xff]
          %v1601 = vld [vmem:[%s2 + $0xe0] sm:$0xff]
          %v1602 = vld [vmem:[%s2 + $0xe8] sm:$0xff]
          %v1603 = vld [vmem:[%s2 + $0xf0] sm:$0xff]
          %v1604 = vld [vmem:[%s2 + $0xf8] sm:$0xff]
          %1605 = vmatprep.subr.mxu0 0.0
          %1606 = vmatpush1.msra.mxu0 %v1573
          %1607 = vmatprep.subr.mxu0 0.0
          %1608 = vmatpush1.msra.mxu0 %v1574
          %1609 = vmatprep.subr.mxu0 0.0
          %1610 = vmatpush1.msra.mxu0 %v1575
          %1611 = vmatprep.subr.mxu0 0.0
          %1612 = vmatpush1.msra.mxu0 %v1576
          %1613 = vmatprep.subr.mxu0 0.0
          %1614 = vmatpush1.msra.mxu0 %v1577
          %1615 = vmatprep.subr.mxu0 0.0
          %1616 = vmatpush1.msra.mxu0 %v1578
          %1617 = vmatprep.subr.mxu0 0.0
          %1618 = vmatpush1.msra.mxu0 %v1579
          %1619 = vmatprep.subr.mxu0 0.0
          %1620 = vmatpush1.msra.mxu0 %v1580
          %1621 = vmatprep.subr.mxu0 0.0
          %1622 = vmatpush1.msra.mxu0 %v1581
          %1623 = vmatprep.subr.mxu0 0.0
          %1624 = vmatpush1.msra.mxu0 %v1582
          %1625 = vmatprep.subr.mxu0 0.0
          %1626 = vmatpush1.msra.mxu0 %v1583
          %1627 = vmatprep.subr.mxu0 0.0
          %1628 = vmatpush1.msra.mxu0 %v1584
          %1629 = vmatprep.subr.mxu0 0.0
          %1630 = vmatpush1.msra.mxu0 %v1585
          %1631 = vmatprep.subr.mxu0 0.0
          %1632 = vmatpush1.msra.mxu0 %v1586
          %1633 = vmatprep.subr.mxu0 0.0
          %1634 = vmatpush1.msra.mxu0 %v1587
          %1635 = vmatprep.subr.mxu0 0.0
          %1636 = vmatpush1.msra.mxu0 %v1588
          %1637 = vmatprep.subr.mxu0 0.0
          %1638 = vmatpush1.msra.mxu0 %v1589
          %1639 = vmatprep.subr.mxu0 0.0
          %1640 = vmatpush1.msra.mxu0 %v1590
          %1641 = vmatprep.subr.mxu0 0.0
          %1642 = vmatpush1.msra.mxu0 %v1591
          %1643 = vmatprep.subr.mxu0 0.0
          %1644 = vmatpush1.msra.mxu0 %v1592
          %1645 = vmatprep.subr.mxu0 0.0
          %1646 = vmatpush1.msra.mxu0 %v1593
          %1647 = vmatprep.subr.mxu0 0.0
          %1648 = vmatpush1.msra.mxu0 %v1594
          %1649 = vmatprep.subr.mxu0 0.0
          %1650 = vmatpush1.msra.mxu0 %v1595
          %1651 = vmatprep.subr.mxu0 0.0
          %1652 = vmatpush1.msra.mxu0 %v1596
          %1653 = vmatprep.subr.mxu0 0.0
          %1654 = vmatpush1.msra.mxu0 %v1597
          %1655 = vmatprep.subr.mxu0 0.0
          %1656 = vmatpush1.msra.mxu0 %v1598
          %1657 = vmatprep.subr.mxu0 0.0
          %1658 = vmatpush1.msra.mxu0 %v1599
          %1659 = vmatprep.subr.mxu0 0.0
          %1660 = vmatpush1.msra.mxu0 %v1600
          %1661 = vmatprep.subr.mxu0 0.0
          %1662 = vmatpush1.msra.mxu0 %v1601
          %1663 = vmatprep.subr.mxu0 0.0
          %1664 = vmatpush1.msra.mxu0 %v1602
          %1665 = vmatprep.subr.mxu0 0.0
          %1666 = vmatpush1.msra.mxu0 %v1603
          %1667 = vmatprep.subr.mxu0 0.0
          %1668 = vmatpush1.msra.mxu0 %v1604
          %1669 = vmatprep.mubr.f32.mxu0 %v1572
          %1670 = vmatmul.mubr.f32.gmra.mrb[0].mxu0 %v1571
          %v1671 = vpop.f32.mrb[0].mxu0
          %v1672 = vadd.f32 0.0, %v1671
          %v1673 = vpop.f32.mrb[0].mxu0
          %1674 = vdwg.mxu0
          %v1676 = vrot.slane %v1672, 2
          %1677 = vrot.lane.b32.xlu0 %v1676, 118
          %v1678 = vpop.permute.xlu0 %1677
          %v1680 = vadd.f32 %v1672, %v1678
          %v1681 = vrot.slane %v1672, 4
          %1682 = vrot.lane.b32.xlu0 %v1681, 108
          %v1683 = vpop.permute.xlu0 %1682
          %v1685 = vadd.f32 %v1680, %v1683
          %v1686 = vrot.slane %v1672, 6
          %1687 = vrot.lane.b32.xlu0 %v1686, 98
          %v1688 = vpop.permute.xlu0 %1687
          %v1690 = vadd.f32 %v1685, %v1688
          %v1691 = vlaneseq
          %v1692 = vshrl.u32 %v1691, 7
          %v1693 = vsub.s32 0, %v1692
          %v1694 = vrot.slane %v1568, %v1693
          %v1695 = vadd.f32 %v1690, %v1694
          %vm1696 = vcmp.ge.f32.partialorder %v1695, 0.0
          %v1697 = vmul.f32 %v1695, 10.0
          %v1698 = vsel %vm1696, %v1695, %v1697
          %v1699 = vlaneseq
          %v1700 = vshrl.u32 %v1699, 7
          %v1701 = vsub.s32 0, %v1700
          %v1702 = vrot.slane %v1569, %v1701
          %v1703 = vmul.f32 %v1698, %v1702
          %vm1704 = vcmask 74752
          %v1705 = vsel %vm1704, %v1703, 0.0
          %1706 = vadd.xlane.f32.xlu0 %v1705
          %v1707 = vpop.xlane.xlu0 %1706
          %v1708 = vlaneseq
          %v1709 = vshrl.u32 %v1708, 7
          %v1710 = vsub.s32 0, %v1709
          %v1711 = vrot.slane %v1570, %v1710
          %v1712 = vadd.f32 %v1707, %v1711
          %vm1713 = vcmask 1024
          %1714 = vst.msk [vmem:[%s4] sm:$0x3] %vm1713, %v1712
        $region85: #{ssl_forward.1} parent=72 // pred_fallthru
          _
        // Predicated region
        $region86: #{ssl_forward.1} parent=72 // pred_check
          %p1715 = pneg %p117
        $region87: #{ssl_forward.1} parent=72 // pred_check_branch
          %1717 = sbr.rel (%p1715) target = $region89
        $region88: #{ssl_forward.1} parent=72 // pred_region
          _
        $region89: #{ssl_forward.1} parent=72 // pred_fallthru
          _
        // Predicated region
        $region90: #{ssl_forward.1} parent=72 // pred_check
          %p1718 = pneg %p117
        $region91: #{ssl_forward.1} parent=72 // pred_check_branch
          %1720 = sbr.rel (%p1718) target = $region93
        $region92: #{ssl_forward.1} parent=72 // pred_region
          _
        $region93: #{ssl_forward.1} parent=72 // pred_fallthru
          _
      $region73: #{ssl_forward.1} parent=5 // pred_fallthru
        _
      %p1721 = scmp.le.s32.totalorder 2, %s10
      // Predicated region
      $region94: #{ssl_forward.1} parent=5 // pred_check
        %p1722 = pneg %p1721
      $region95: #{ssl_forward.1} parent=5 // pred_check_branch
        %1724 = sbr.rel (%p1722) target = $region97
      $region96: #{ssl_forward.1} parent=5 // pred_region
        %s1725 = ssub.s32 %s10, 2
      $region97: #{ssl_forward.1} parent=5 // pred_fallthru
        _
    $region6: #{ssl_forward.1} parent=1 // loop_footer
      %s14 = sadd.s32 1, %s10
    $region7: #{ssl_forward.1} parent=1 // loop_footer_branch
      %9 = sbr.rel target = $region3
    $region8: #{ssl_forward.1} parent=1 // loop_exit
      _

</llo_original>
